<compile_context>
chip_gen: v6e
topology: v6e:2x2x1
jax: 0.10.0
libtpu: 0.0.40
codegen_flags: <defaults>
</compile_context>

<pallas_src>
import jax
import jax.numpy as jnp
from jax import lax
from jax.experimental import pallas as pl
from jax.experimental.pallas import tpu as pltpu

# Small shapes consistent with the module's config
VOCAB = 30        # text_vocabulary.max_index + 1
EMB = 50          # config.text_encoder.embeddings.dimensions
HID = 128         # config.text_encoder.num_hidden_dims
OUT = 40          # onehot_encoder.dimensionality
OUT_PAD = 128     # lane-padded output width
SEQ = 8           # input text length


def tgen_classifier_kernel(ids_ref, emb_wih_ref,
                           whh_i_ref, whh_f_ref, whh_g_ref, whh_o_ref,
                           b_ref, wlin_ref, blin_ref, out_ref):
    """Whole forward hot path in VMEM.

    ids_ref     : (T, 1)    int32  token ids
    emb_wih_ref : (V, 4H)   bf16   embedding table pre-multiplied by w_ih.T
    whh_*_ref   : (H, H)    bf16   per-gate hidden->hidden weights (i, f, g, o)
    b_ref       : (1, 4H)   f32    b_ih + b_hh (combined)
    wlin_ref    : (H, 128)  bf16   classif_linear weight, transposed + lane-padded
    blin_ref    : (1, 128)  f32    classif_linear bias, lane-padded
    out_ref     : (1, 128)  f32    sigmoid(linear(h_T)), lane-padded
    """
    T = ids_ref.shape[0]
    V = emb_wih_ref.shape[0]
    H = whh_i_ref.shape[0]

    # Embedding gather + input projection fused into a single one-hot MXU matmul.
    onehot = (ids_ref[...] == lax.broadcasted_iota(jnp.int32, (T, V), 1)
              ).astype(emb_wih_ref.dtype)                                # (T, V)
    gx = jnp.dot(onehot, emb_wih_ref[...],
                 preferred_element_type=jnp.float32) + b_ref[...]        # (T, 4H)

    def sigm(z):  # sigmoid via tanh: one EUP op instead of exp + reciprocal
        return 0.5 * jnp.tanh(0.5 * z) + 0.5

    h = jnp.zeros((1, H), jnp.float32)
    c = jnp.zeros((1, H), jnp.float32)

    # T is small and static: fully unroll so every slice is static.  Four
    # narrow per-gate dots (issued i, f, g, o) let EUP work on early gates
    # while the MXU is still producing later ones.  Weight refs are re-read
    # per step so the tiles aren't forced live across the whole recurrence.
    for t in range(T):
        hb = h.astype(jnp.bfloat16)
        zi = gx[t:t + 1, 0:H] + jnp.dot(
            hb, whh_i_ref[...], preferred_element_type=jnp.float32)
        zf = gx[t:t + 1, H:2 * H] + jnp.dot(
            hb, whh_f_ref[...], preferred_element_type=jnp.float32)
        zg = gx[t:t + 1, 2 * H:3 * H] + jnp.dot(
            hb, whh_g_ref[...], preferred_element_type=jnp.float32)
        zo = gx[t:t + 1, 3 * H:4 * H] + jnp.dot(
            hb, whh_o_ref[...], preferred_element_type=jnp.float32)
        # PyTorch LSTM gate order: i, f, g, o
        i = sigm(zi)
        f = sigm(zf)
        g = jnp.tanh(zg)
        o = sigm(zo)
        c = f * c + i * g
        h = o * jnp.tanh(c)

    logits = jnp.dot(h.astype(jnp.bfloat16), wlin_ref[...],
                     preferred_element_type=jnp.float32) + blin_ref[...]
    out_ref[...] = 0.5 * jnp.tanh(0.5 * logits) + 0.5


def prepare_params(params):
    """One-time param prep (fold emb@w_ih, per-gate split, padding, bf16 cast)."""
    emb = params["embedding"].astype(jnp.float32)                        # (V, E)
    w_ih = params["w_ih"].astype(jnp.float32)                            # (4H, E)
    w_hh = params["w_hh"].astype(jnp.float32)                            # (4H, H)

    emb_wih = (emb @ w_ih.T).astype(jnp.bfloat16)                        # (V, 4H)

    whh_t = w_hh.T                                                       # (H, 4H)
    whh_i = whh_t[:, 0 * HID:1 * HID].astype(jnp.bfloat16)
    whh_f = whh_t[:, 1 * HID:2 * HID].astype(jnp.bfloat16)
    whh_g = whh_t[:, 2 * HID:3 * HID].astype(jnp.bfloat16)
    whh_o = whh_t[:, 3 * HID:4 * HID].astype(jnp.bfloat16)

    wlin_pad = jnp.zeros((HID, OUT_PAD), jnp.float32)
    wlin_pad = wlin_pad.at[:, :OUT].set(params["w_lin"].T.astype(jnp.float32))
    blin_pad = jnp.zeros((1, OUT_PAD), jnp.float32)
    blin_pad = blin_pad.at[0, :OUT].set(params["b_lin"].astype(jnp.float32))

    return {
        "emb_wih": emb_wih,                                              # (V, 4H) bf16
        "whh_i": whh_i, "whh_f": whh_f, "whh_g": whh_g, "whh_o": whh_o,  # (H, H) bf16
        "b": (params["b_ih"] + params["b_hh"])[None, :].astype(jnp.float32),
        "wlin": wlin_pad.astype(jnp.bfloat16),                           # (H, 128) bf16
        "blin": blin_pad,                                                # (1, 128) f32
    }


def _cost_estimate():
    flops = (2 * SEQ * VOCAB * 4 * HID          # one-hot @ emb_wih
             + SEQ * 4 * 2 * HID * HID          # 4 per-gate dots per step
             + 2 * HID * OUT_PAD)               # final linear
    transcendentals = 5 * SEQ * HID + OUT_PAD   # 5 tanh per step + final sigmoid
    bytes_accessed = (SEQ * 4                   # ids
                      + VOCAB * 4 * HID * 2     # emb_wih (bf16)
                      + 4 * HID * HID * 2       # whh gates (bf16)
                      + 4 * HID * 4             # b (f32)
                      + HID * OUT_PAD * 2       # wlin (bf16)
                      + OUT_PAD * 4             # blin (f32)
                      + OUT_PAD * 4)            # out (f32)
    return pl.CostEstimate(flops=flops, transcendentals=transcendentals,
                           bytes_accessed=bytes_accessed)


@jax.jit
def tgen_sem_classifier_forward(token_ids, prep):
    ids2d = token_ids.astype(jnp.int32).reshape(-1, 1)                   # (T, 1)
    out = pl.pallas_call(
        tgen_classifier_kernel,
        out_shape=jax.ShapeDtypeStruct((1, OUT_PAD), jnp.float32),
        in_specs=[pl.BlockSpec(memory_space=pltpu.MemorySpace.VMEM)] * 9,
        out_specs=pl.BlockSpec(memory_space=pltpu.MemorySpace.VMEM),
        cost_estimate=_cost_estimate(),
    )(ids2d, prep["emb_wih"],
      prep["whh_i"], prep["whh_f"], prep["whh_g"], prep["whh_o"],
      prep["b"], prep["wlin"], prep["blin"])
    return out[0, :OUT]  # (OUT,) — matches torch classif_sigmoid(linear(h_T))


def init_params(key):
    ks = jax.random.split(key, 7)
    s_lstm = 1.0 / jnp.sqrt(HID)
    s_lin = 1.0 / jnp.sqrt(HID)
    return {
        "embedding": jax.random.normal(ks[0], (VOCAB, EMB), jnp.float32) * 0.1,
        "w_ih": jax.random.uniform(ks[1], (4 * HID, EMB), jnp.float32, -s_lstm, s_lstm),
        "w_hh": jax.random.uniform(ks[2], (4 * HID, HID), jnp.float32, -s_lstm, s_lstm),
        "b_ih": jax.random.uniform(ks[3], (4 * HID,), jnp.float32, -s_lstm, s_lstm),
        "b_hh": jax.random.uniform(ks[4], (4 * HID,), jnp.float32, -s_lstm, s_lstm),
        "w_lin": jax.random.uniform(ks[5], (OUT, HID), jnp.float32, -s_lin, s_lin),
        "b_lin": jax.random.uniform(ks[6], (OUT,), jnp.float32, -s_lin, s_lin),
    }


def reference_forward(token_ids, params):
    """Pure-JAX f32 reference mirroring the PyTorch forward."""
    x = jnp.take(params["embedding"], token_ids, axis=0)  # (T, E)
    H = HID

    def step(carry, x_t):
        h, c = carry
        gates = (x_t @ params["w_ih"].T + params["b_ih"]
                 + h @ params["w_hh"].T + params["b_hh"])
        i = jax.nn.sigmoid(gates[0:H])
        f = jax.nn.sigmoid(gates[H:2 * H])
        g = jnp.tanh(gates[2 * H:3 * H])
        o = jax.nn.sigmoid(gates[3 * H:4 * H])
        c = f * c + i * g
        h = o * jnp.tanh(c)
        return (h, c), None

    (h, _), _ = lax.scan(step, (jnp.zeros((H,)), jnp.zeros((H,))), x)
    return jax.nn.sigmoid(h @ params["w_lin"].T + params["b_lin"])


if __name__ == "__main__":
    key = jax.random.PRNGKey(0)
    pkey, tkey = jax.random.split(key)
    params = init_params(pkey)
    prep = prepare_params(params)
    # deterministic small input text (token ids)
    input_text_ints = jax.random.randint(tkey, (SEQ,), 0, VOCAB, dtype=jnp.int32)

    out = tgen_sem_classifier_forward(input_text_ints, prep)
    out = jax.block_until_ready(out)

    ref = reference_forward(input_text_ints, params)
    assert out.shape == (OUT,)
    # bf16 weights in the kernel -> relaxed tolerance vs. the f32 reference.
    assert jnp.allclose(out, ref, atol=3e-2), (out, ref)

    # TODO(synk): training-time pieces (Adam optimizer, CrossEntropyLoss, scheduler)
    # are not part of the forward pass and are intentionally not translated.
    print("KERNEL_OK")
</pallas_src>

<mosaic_0001>
module attributes {stable_mosaic.version = 11 : i64} {
  func.func @tgen_classifier_kernel(%arg0: memref<8x1xi32, #tpu.memory_space<vmem>>, %arg1: memref<30x512xbf16, #tpu.memory_space<vmem>>, %arg2: memref<128x128xbf16, #tpu.memory_space<vmem>>, %arg3: memref<128x128xbf16, #tpu.memory_space<vmem>>, %arg4: memref<128x128xbf16, #tpu.memory_space<vmem>>, %arg5: memref<128x128xbf16, #tpu.memory_space<vmem>>, %arg6: memref<1x512xf32, #tpu.memory_space<vmem>>, %arg7: memref<128x128xbf16, #tpu.memory_space<vmem>>, %arg8: memref<1x128xf32, #tpu.memory_space<vmem>>, %arg9: memref<1x128xf32, #tpu.memory_space<vmem>>) attributes {dimension_semantics = [], scalar_prefetch = 0 : i64, scratch_operands = 0 : i64, tpu.core_type = #tpu.core_type<tc>} {
    %c0 = arith.constant 0 : index
    %c0_0 = arith.constant 0 : index
    %0 = vector.load %arg0[%c0, %c0_0] : memref<8x1xi32, #tpu.memory_space<vmem>>, vector<8x1xi32>
    %1 = tpu.iota {dimensions = array<i32: 1>} : vector<8x30xi32>
    %2 = vector.broadcast %0 : vector<8x1xi32> to vector<8x30xi32>
    %3 = arith.cmpi eq, %2, %1 : vector<8x30xi32>
    %4 = arith.extui %3 : vector<8x30xi1> to vector<8x30xi32>
    %5 = arith.sitofp %4 : vector<8x30xi32> to vector<8x30xf32>
    %6 = arith.truncf %5 : vector<8x30xf32> to vector<8x30xbf16>
    %c0_1 = arith.constant 0 : index
    %c0_2 = arith.constant 0 : index
    %7 = vector.load %arg1[%c0_1, %c0_2] : memref<30x512xbf16, #tpu.memory_space<vmem>>, vector<30x512xbf16>
    %cst = arith.constant dense<0.000000e+00> : vector<8x512xf32>
    %8 = tpu.matmul %6, %7, %cst {dimension_numbers = #tpu.dot_dimension_numbers<[1], [0], [0], [1], [0, 0, 1, 1], [], []>} : vector<8x30xbf16>, vector<30x512xbf16>, vector<8x512xf32> -> vector<8x512xf32>
    %c0_3 = arith.constant 0 : index
    %c0_4 = arith.constant 0 : index
    %9 = vector.load %arg6[%c0_3, %c0_4] : memref<1x512xf32, #tpu.memory_space<vmem>>, vector<1x512xf32>
    %10 = vector.broadcast %9 : vector<1x512xf32> to vector<8x512xf32>
    %11 = arith.addf %8, %10 : vector<8x512xf32>
    %cst_5 = arith.constant 0.000000e+00 : f32
    %12 = vector.broadcast %cst_5 : f32 to vector<1x128xf32>
    %cst_6 = arith.constant 0.000000e+00 : f32
    %13 = vector.broadcast %cst_6 : f32 to vector<1x128xf32>
    %14 = arith.truncf %12 : vector<1x128xf32> to vector<1x128xbf16>
    %15 = vector.extract_strided_slice %11 {offsets = [0, 0], sizes = [1, 128], strides = [1, 1]} : vector<8x512xf32> to vector<1x128xf32>
    %c0_7 = arith.constant 0 : index
    %c0_8 = arith.constant 0 : index
    %16 = vector.load %arg2[%c0_7, %c0_8] : memref<128x128xbf16, #tpu.memory_space<vmem>>, vector<128x128xbf16>
    %cst_9 = arith.constant dense<0.000000e+00> : vector<1x128xf32>
    %17 = tpu.matmul %14, %16, %cst_9 {dimension_numbers = #tpu.dot_dimension_numbers<[1], [0], [0], [1], [0, 0, 1, 1], [], []>} : vector<1x128xbf16>, vector<128x128xbf16>, vector<1x128xf32> -> vector<1x128xf32>
    %18 = arith.addf %15, %17 : vector<1x128xf32>
    %19 = vector.extract_strided_slice %11 {offsets = [0, 128], sizes = [1, 128], strides = [1, 1]} : vector<8x512xf32> to vector<1x128xf32>
    %c0_10 = arith.constant 0 : index
    %c0_11 = arith.constant 0 : index
    %20 = vector.load %arg3[%c0_10, %c0_11] : memref<128x128xbf16, #tpu.memory_space<vmem>>, vector<128x128xbf16>
    %cst_12 = arith.constant dense<0.000000e+00> : vector<1x128xf32>
    %21 = tpu.matmul %14, %20, %cst_12 {dimension_numbers = #tpu.dot_dimension_numbers<[1], [0], [0], [1], [0, 0, 1, 1], [], []>} : vector<1x128xbf16>, vector<128x128xbf16>, vector<1x128xf32> -> vector<1x128xf32>
    %22 = arith.addf %19, %21 : vector<1x128xf32>
    %23 = vector.extract_strided_slice %11 {offsets = [0, 256], sizes = [1, 128], strides = [1, 1]} : vector<8x512xf32> to vector<1x128xf32>
    %c0_13 = arith.constant 0 : index
    %c0_14 = arith.constant 0 : index
    %24 = vector.load %arg4[%c0_13, %c0_14] : memref<128x128xbf16, #tpu.memory_space<vmem>>, vector<128x128xbf16>
    %cst_15 = arith.constant dense<0.000000e+00> : vector<1x128xf32>
    %25 = tpu.matmul %14, %24, %cst_15 {dimension_numbers = #tpu.dot_dimension_numbers<[1], [0], [0], [1], [0, 0, 1, 1], [], []>} : vector<1x128xbf16>, vector<128x128xbf16>, vector<1x128xf32> -> vector<1x128xf32>
    %26 = arith.addf %23, %25 : vector<1x128xf32>
    %27 = vector.extract_strided_slice %11 {offsets = [0, 384], sizes = [1, 128], strides = [1, 1]} : vector<8x512xf32> to vector<1x128xf32>
    %c0_16 = arith.constant 0 : index
    %c0_17 = arith.constant 0 : index
    %28 = vector.load %arg5[%c0_16, %c0_17] : memref<128x128xbf16, #tpu.memory_space<vmem>>, vector<128x128xbf16>
    %cst_18 = arith.constant dense<0.000000e+00> : vector<1x128xf32>
    %29 = tpu.matmul %14, %28, %cst_18 {dimension_numbers = #tpu.dot_dimension_numbers<[1], [0], [0], [1], [0, 0, 1, 1], [], []>} : vector<1x128xbf16>, vector<128x128xbf16>, vector<1x128xf32> -> vector<1x128xf32>
    %30 = arith.addf %27, %29 : vector<1x128xf32>
    %cst_19 = arith.constant 5.000000e-01 : f32
    %31 = vector.broadcast %cst_19 : f32 to vector<1x128xf32>
    %32 = arith.mulf %31, %18 : vector<1x128xf32>
    %33 = math.tanh %32 : vector<1x128xf32>
    %cst_20 = arith.constant 5.000000e-01 : f32
    %34 = vector.broadcast %cst_20 : f32 to vector<1x128xf32>
    %35 = arith.mulf %34, %33 : vector<1x128xf32>
    %cst_21 = arith.constant 5.000000e-01 : f32
    %36 = vector.broadcast %cst_21 : f32 to vector<1x128xf32>
    %37 = arith.addf %35, %36 : vector<1x128xf32>
    %cst_22 = arith.constant 5.000000e-01 : f32
    %38 = vector.broadcast %cst_22 : f32 to vector<1x128xf32>
    %39 = arith.mulf %38, %22 : vector<1x128xf32>
    %40 = math.tanh %39 : vector<1x128xf32>
    %cst_23 = arith.constant 5.000000e-01 : f32
    %41 = vector.broadcast %cst_23 : f32 to vector<1x128xf32>
    %42 = arith.mulf %41, %40 : vector<1x128xf32>
    %cst_24 = arith.constant 5.000000e-01 : f32
    %43 = vector.broadcast %cst_24 : f32 to vector<1x128xf32>
    %44 = arith.addf %42, %43 : vector<1x128xf32>
    %45 = math.tanh %26 : vector<1x128xf32>
    %cst_25 = arith.constant 5.000000e-01 : f32
    %46 = vector.broadcast %cst_25 : f32 to vector<1x128xf32>
    %47 = arith.mulf %46, %30 : vector<1x128xf32>
    %48 = math.tanh %47 : vector<1x128xf32>
    %cst_26 = arith.constant 5.000000e-01 : f32
    %49 = vector.broadcast %cst_26 : f32 to vector<1x128xf32>
    %50 = arith.mulf %49, %48 : vector<1x128xf32>
    %cst_27 = arith.constant 5.000000e-01 : f32
    %51 = vector.broadcast %cst_27 : f32 to vector<1x128xf32>
    %52 = arith.addf %50, %51 : vector<1x128xf32>
    %53 = arith.mulf %44, %13 : vector<1x128xf32>
    %54 = arith.mulf %37, %45 : vector<1x128xf32>
    %55 = arith.addf %53, %54 : vector<1x128xf32>
    %56 = math.tanh %55 : vector<1x128xf32>
    %57 = arith.mulf %52, %56 : vector<1x128xf32>
    %58 = arith.truncf %57 : vector<1x128xf32> to vector<1x128xbf16>
    %59 = vector.extract_strided_slice %11 {offsets = [1, 0], sizes = [1, 128], strides = [1, 1]} : vector<8x512xf32> to vector<1x128xf32>
    %c0_28 = arith.constant 0 : index
    %c0_29 = arith.constant 0 : index
    %60 = vector.load %arg2[%c0_28, %c0_29] : memref<128x128xbf16, #tpu.memory_space<vmem>>, vector<128x128xbf16>
    %cst_30 = arith.constant dense<0.000000e+00> : vector<1x128xf32>
    %61 = tpu.matmul %58, %60, %cst_30 {dimension_numbers = #tpu.dot_dimension_numbers<[1], [0], [0], [1], [0, 0, 1, 1], [], []>} : vector<1x128xbf16>, vector<128x128xbf16>, vector<1x128xf32> -> vector<1x128xf32>
    %62 = arith.addf %59, %61 : vector<1x128xf32>
    %63 = vector.extract_strided_slice %11 {offsets = [1, 128], sizes = [1, 128], strides = [1, 1]} : vector<8x512xf32> to vector<1x128xf32>
    %c0_31 = arith.constant 0 : index
    %c0_32 = arith.constant 0 : index
    %64 = vector.load %arg3[%c0_31, %c0_32] : memref<128x128xbf16, #tpu.memory_space<vmem>>, vector<128x128xbf16>
    %cst_33 = arith.constant dense<0.000000e+00> : vector<1x128xf32>
    %65 = tpu.matmul %58, %64, %cst_33 {dimension_numbers = #tpu.dot_dimension_numbers<[1], [0], [0], [1], [0, 0, 1, 1], [], []>} : vector<1x128xbf16>, vector<128x128xbf16>, vector<1x128xf32> -> vector<1x128xf32>
    %66 = arith.addf %63, %65 : vector<1x128xf32>
    %67 = vector.extract_strided_slice %11 {offsets = [1, 256], sizes = [1, 128], strides = [1, 1]} : vector<8x512xf32> to vector<1x128xf32>
    %c0_34 = arith.constant 0 : index
    %c0_35 = arith.constant 0 : index
    %68 = vector.load %arg4[%c0_34, %c0_35] : memref<128x128xbf16, #tpu.memory_space<vmem>>, vector<128x128xbf16>
    %cst_36 = arith.constant dense<0.000000e+00> : vector<1x128xf32>
    %69 = tpu.matmul %58, %68, %cst_36 {dimension_numbers = #tpu.dot_dimension_numbers<[1], [0], [0], [1], [0, 0, 1, 1], [], []>} : vector<1x128xbf16>, vector<128x128xbf16>, vector<1x128xf32> -> vector<1x128xf32>
    %70 = arith.addf %67, %69 : vector<1x128xf32>
    %71 = vector.extract_strided_slice %11 {offsets = [1, 384], sizes = [1, 128], strides = [1, 1]} : vector<8x512xf32> to vector<1x128xf32>
    %c0_37 = arith.constant 0 : index
    %c0_38 = arith.constant 0 : index
    %72 = vector.load %arg5[%c0_37, %c0_38] : memref<128x128xbf16, #tpu.memory_space<vmem>>, vector<128x128xbf16>
    %cst_39 = arith.constant dense<0.000000e+00> : vector<1x128xf32>
    %73 = tpu.matmul %58, %72, %cst_39 {dimension_numbers = #tpu.dot_dimension_numbers<[1], [0], [0], [1], [0, 0, 1, 1], [], []>} : vector<1x128xbf16>, vector<128x128xbf16>, vector<1x128xf32> -> vector<1x128xf32>
    %74 = arith.addf %71, %73 : vector<1x128xf32>
    %cst_40 = arith.constant 5.000000e-01 : f32
    %75 = vector.broadcast %cst_40 : f32 to vector<1x128xf32>
    %76 = arith.mulf %75, %62 : vector<1x128xf32>
    %77 = math.tanh %76 : vector<1x128xf32>
    %cst_41 = arith.constant 5.000000e-01 : f32
    %78 = vector.broadcast %cst_41 : f32 to vector<1x128xf32>
    %79 = arith.mulf %78, %77 : vector<1x128xf32>
    %cst_42 = arith.constant 5.000000e-01 : f32
    %80 = vector.broadcast %cst_42 : f32 to vector<1x128xf32>
    %81 = arith.addf %79, %80 : vector<1x128xf32>
    %cst_43 = arith.constant 5.000000e-01 : f32
    %82 = vector.broadcast %cst_43 : f32 to vector<1x128xf32>
    %83 = arith.mulf %82, %66 : vector<1x128xf32>
    %84 = math.tanh %83 : vector<1x128xf32>
    %cst_44 = arith.constant 5.000000e-01 : f32
    %85 = vector.broadcast %cst_44 : f32 to vector<1x128xf32>
    %86 = arith.mulf %85, %84 : vector<1x128xf32>
    %cst_45 = arith.constant 5.000000e-01 : f32
    %87 = vector.broadcast %cst_45 : f32 to vector<1x128xf32>
    %88 = arith.addf %86, %87 : vector<1x128xf32>
    %89 = math.tanh %70 : vector<1x128xf32>
    %cst_46 = arith.constant 5.000000e-01 : f32
    %90 = vector.broadcast %cst_46 : f32 to vector<1x128xf32>
    %91 = arith.mulf %90, %74 : vector<1x128xf32>
    %92 = math.tanh %91 : vector<1x128xf32>
    %cst_47 = arith.constant 5.000000e-01 : f32
    %93 = vector.broadcast %cst_47 : f32 to vector<1x128xf32>
    %94 = arith.mulf %93, %92 : vector<1x128xf32>
    %cst_48 = arith.constant 5.000000e-01 : f32
    %95 = vector.broadcast %cst_48 : f32 to vector<1x128xf32>
    %96 = arith.addf %94, %95 : vector<1x128xf32>
    %97 = arith.mulf %88, %55 : vector<1x128xf32>
    %98 = arith.mulf %81, %89 : vector<1x128xf32>
    %99 = arith.addf %97, %98 : vector<1x128xf32>
    %100 = math.tanh %99 : vector<1x128xf32>
    %101 = arith.mulf %96, %100 : vector<1x128xf32>
    %102 = arith.truncf %101 : vector<1x128xf32> to vector<1x128xbf16>
    %103 = vector.extract_strided_slice %11 {offsets = [2, 0], sizes = [1, 128], strides = [1, 1]} : vector<8x512xf32> to vector<1x128xf32>
    %c0_49 = arith.constant 0 : index
    %c0_50 = arith.constant 0 : index
    %104 = vector.load %arg2[%c0_49, %c0_50] : memref<128x128xbf16, #tpu.memory_space<vmem>>, vector<128x128xbf16>
    %cst_51 = arith.constant dense<0.000000e+00> : vector<1x128xf32>
    %105 = tpu.matmul %102, %104, %cst_51 {dimension_numbers = #tpu.dot_dimension_numbers<[1], [0], [0], [1], [0, 0, 1, 1], [], []>} : vector<1x128xbf16>, vector<128x128xbf16>, vector<1x128xf32> -> vector<1x128xf32>
    %106 = arith.addf %103, %105 : vector<1x128xf32>
    %107 = vector.extract_strided_slice %11 {offsets = [2, 128], sizes = [1, 128], strides = [1, 1]} : vector<8x512xf32> to vector<1x128xf32>
    %c0_52 = arith.constant 0 : index
    %c0_53 = arith.constant 0 : index
    %108 = vector.load %arg3[%c0_52, %c0_53] : memref<128x128xbf16, #tpu.memory_space<vmem>>, vector<128x128xbf16>
    %cst_54 = arith.constant dense<0.000000e+00> : vector<1x128xf32>
    %109 = tpu.matmul %102, %108, %cst_54 {dimension_numbers = #tpu.dot_dimension_numbers<[1], [0], [0], [1], [0, 0, 1, 1], [], []>} : vector<1x128xbf16>, vector<128x128xbf16>, vector<1x128xf32> -> vector<1x128xf32>
    %110 = arith.addf %107, %109 : vector<1x128xf32>
    %111 = vector.extract_strided_slice %11 {offsets = [2, 256], sizes = [1, 128], strides = [1, 1]} : vector<8x512xf32> to vector<1x128xf32>
    %c0_55 = arith.constant 0 : index
    %c0_56 = arith.constant 0 : index
    %112 = vector.load %arg4[%c0_55, %c0_56] : memref<128x128xbf16, #tpu.memory_space<vmem>>, vector<128x128xbf16>
    %cst_57 = arith.constant dense<0.000000e+00> : vector<1x128xf32>
    %113 = tpu.matmul %102, %112, %cst_57 {dimension_numbers = #tpu.dot_dimension_numbers<[1], [0], [0], [1], [0, 0, 1, 1], [], []>} : vector<1x128xbf16>, vector<128x128xbf16>, vector<1x128xf32> -> vector<1x128xf32>
    %114 = arith.addf %111, %113 : vector<1x128xf32>
    %115 = vector.extract_strided_slice %11 {offsets = [2, 384], sizes = [1, 128], strides = [1, 1]} : vector<8x512xf32> to vector<1x128xf32>
    %c0_58 = arith.constant 0 : index
    %c0_59 = arith.constant 0 : index
    %116 = vector.load %arg5[%c0_58, %c0_59] : memref<128x128xbf16, #tpu.memory_space<vmem>>, vector<128x128xbf16>
    %cst_60 = arith.constant dense<0.000000e+00> : vector<1x128xf32>
    %117 = tpu.matmul %102, %116, %cst_60 {dimension_numbers = #tpu.dot_dimension_numbers<[1], [0], [0], [1], [0, 0, 1, 1], [], []>} : vector<1x128xbf16>, vector<128x128xbf16>, vector<1x128xf32> -> vector<1x128xf32>
    %118 = arith.addf %115, %117 : vector<1x128xf32>
    %cst_61 = arith.constant 5.000000e-01 : f32
    %119 = vector.broadcast %cst_61 : f32 to vector<1x128xf32>
    %120 = arith.mulf %119, %106 : vector<1x128xf32>
    %121 = math.tanh %120 : vector<1x128xf32>
    %cst_62 = arith.constant 5.000000e-01 : f32
    %122 = vector.broadcast %cst_62 : f32 to vector<1x128xf32>
    %123 = arith.mulf %122, %121 : vector<1x128xf32>
    %cst_63 = arith.constant 5.000000e-01 : f32
    %124 = vector.broadcast %cst_63 : f32 to vector<1x128xf32>
    %125 = arith.addf %123, %124 : vector<1x128xf32>
    %cst_64 = arith.constant 5.000000e-01 : f32
    %126 = vector.broadcast %cst_64 : f32 to vector<1x128xf32>
    %127 = arith.mulf %126, %110 : vector<1x128xf32>
    %128 = math.tanh %127 : vector<1x128xf32>
    %cst_65 = arith.constant 5.000000e-01 : f32
    %129 = vector.broadcast %cst_65 : f32 to vector<1x128xf32>
    %130 = arith.mulf %129, %128 : vector<1x128xf32>
    %cst_66 = arith.constant 5.000000e-01 : f32
    %131 = vector.broadcast %cst_66 : f32 to vector<1x128xf32>
    %132 = arith.addf %130, %131 : vector<1x128xf32>
    %133 = math.tanh %114 : vector<1x128xf32>
    %cst_67 = arith.constant 5.000000e-01 : f32
    %134 = vector.broadcast %cst_67 : f32 to vector<1x128xf32>
    %135 = arith.mulf %134, %118 : vector<1x128xf32>
    %136 = math.tanh %135 : vector<1x128xf32>
    %cst_68 = arith.constant 5.000000e-01 : f32
    %137 = vector.broadcast %cst_68 : f32 to vector<1x128xf32>
    %138 = arith.mulf %137, %136 : vector<1x128xf32>
    %cst_69 = arith.constant 5.000000e-01 : f32
    %139 = vector.broadcast %cst_69 : f32 to vector<1x128xf32>
    %140 = arith.addf %138, %139 : vector<1x128xf32>
    %141 = arith.mulf %132, %99 : vector<1x128xf32>
    %142 = arith.mulf %125, %133 : vector<1x128xf32>
    %143 = arith.addf %141, %142 : vector<1x128xf32>
    %144 = math.tanh %143 : vector<1x128xf32>
    %145 = arith.mulf %140, %144 : vector<1x128xf32>
    %146 = arith.truncf %145 : vector<1x128xf32> to vector<1x128xbf16>
    %147 = vector.extract_strided_slice %11 {offsets = [3, 0], sizes = [1, 128], strides = [1, 1]} : vector<8x512xf32> to vector<1x128xf32>
    %c0_70 = arith.constant 0 : index
    %c0_71 = arith.constant 0 : index
    %148 = vector.load %arg2[%c0_70, %c0_71] : memref<128x128xbf16, #tpu.memory_space<vmem>>, vector<128x128xbf16>
    %cst_72 = arith.constant dense<0.000000e+00> : vector<1x128xf32>
    %149 = tpu.matmul %146, %148, %cst_72 {dimension_numbers = #tpu.dot_dimension_numbers<[1], [0], [0], [1], [0, 0, 1, 1], [], []>} : vector<1x128xbf16>, vector<128x128xbf16>, vector<1x128xf32> -> vector<1x128xf32>
    %150 = arith.addf %147, %149 : vector<1x128xf32>
    %151 = vector.extract_strided_slice %11 {offsets = [3, 128], sizes = [1, 128], strides = [1, 1]} : vector<8x512xf32> to vector<1x128xf32>
    %c0_73 = arith.constant 0 : index
    %c0_74 = arith.constant 0 : index
    %152 = vector.load %arg3[%c0_73, %c0_74] : memref<128x128xbf16, #tpu.memory_space<vmem>>, vector<128x128xbf16>
    %cst_75 = arith.constant dense<0.000000e+00> : vector<1x128xf32>
    %153 = tpu.matmul %146, %152, %cst_75 {dimension_numbers = #tpu.dot_dimension_numbers<[1], [0], [0], [1], [0, 0, 1, 1], [], []>} : vector<1x128xbf16>, vector<128x128xbf16>, vector<1x128xf32> -> vector<1x128xf32>
    %154 = arith.addf %151, %153 : vector<1x128xf32>
    %155 = vector.extract_strided_slice %11 {offsets = [3, 256], sizes = [1, 128], strides = [1, 1]} : vector<8x512xf32> to vector<1x128xf32>
    %c0_76 = arith.constant 0 : index
    %c0_77 = arith.constant 0 : index
    %156 = vector.load %arg4[%c0_76, %c0_77] : memref<128x128xbf16, #tpu.memory_space<vmem>>, vector<128x128xbf16>
    %cst_78 = arith.constant dense<0.000000e+00> : vector<1x128xf32>
    %157 = tpu.matmul %146, %156, %cst_78 {dimension_numbers = #tpu.dot_dimension_numbers<[1], [0], [0], [1], [0, 0, 1, 1], [], []>} : vector<1x128xbf16>, vector<128x128xbf16>, vector<1x128xf32> -> vector<1x128xf32>
    %158 = arith.addf %155, %157 : vector<1x128xf32>
    %159 = vector.extract_strided_slice %11 {offsets = [3, 384], sizes = [1, 128], strides = [1, 1]} : vector<8x512xf32> to vector<1x128xf32>
    %c0_79 = arith.constant 0 : index
    %c0_80 = arith.constant 0 : index
    %160 = vector.load %arg5[%c0_79, %c0_80] : memref<128x128xbf16, #tpu.memory_space<vmem>>, vector<128x128xbf16>
    %cst_81 = arith.constant dense<0.000000e+00> : vector<1x128xf32>
    %161 = tpu.matmul %146, %160, %cst_81 {dimension_numbers = #tpu.dot_dimension_numbers<[1], [0], [0], [1], [0, 0, 1, 1], [], []>} : vector<1x128xbf16>, vector<128x128xbf16>, vector<1x128xf32> -> vector<1x128xf32>
    %162 = arith.addf %159, %161 : vector<1x128xf32>
    %cst_82 = arith.constant 5.000000e-01 : f32
    %163 = vector.broadcast %cst_82 : f32 to vector<1x128xf32>
    %164 = arith.mulf %163, %150 : vector<1x128xf32>
    %165 = math.tanh %164 : vector<1x128xf32>
    %cst_83 = arith.constant 5.000000e-01 : f32
    %166 = vector.broadcast %cst_83 : f32 to vector<1x128xf32>
    %167 = arith.mulf %166, %165 : vector<1x128xf32>
    %cst_84 = arith.constant 5.000000e-01 : f32
    %168 = vector.broadcast %cst_84 : f32 to vector<1x128xf32>
    %169 = arith.addf %167, %168 : vector<1x128xf32>
    %cst_85 = arith.constant 5.000000e-01 : f32
    %170 = vector.broadcast %cst_85 : f32 to vector<1x128xf32>
    %171 = arith.mulf %170, %154 : vector<1x128xf32>
    %172 = math.tanh %171 : vector<1x128xf32>
    %cst_86 = arith.constant 5.000000e-01 : f32
    %173 = vector.broadcast %cst_86 : f32 to vector<1x128xf32>
    %174 = arith.mulf %173, %172 : vector<1x128xf32>
    %cst_87 = arith.constant 5.000000e-01 : f32
    %175 = vector.broadcast %cst_87 : f32 to vector<1x128xf32>
    %176 = arith.addf %174, %175 : vector<1x128xf32>
    %177 = math.tanh %158 : vector<1x128xf32>
    %cst_88 = arith.constant 5.000000e-01 : f32
    %178 = vector.broadcast %cst_88 : f32 to vector<1x128xf32>
    %179 = arith.mulf %178, %162 : vector<1x128xf32>
    %180 = math.tanh %179 : vector<1x128xf32>
    %cst_89 = arith.constant 5.000000e-01 : f32
    %181 = vector.broadcast %cst_89 : f32 to vector<1x128xf32>
    %182 = arith.mulf %181, %180 : vector<1x128xf32>
    %cst_90 = arith.constant 5.000000e-01 : f32
    %183 = vector.broadcast %cst_90 : f32 to vector<1x128xf32>
    %184 = arith.addf %182, %183 : vector<1x128xf32>
    %185 = arith.mulf %176, %143 : vector<1x128xf32>
    %186 = arith.mulf %169, %177 : vector<1x128xf32>
    %187 = arith.addf %185, %186 : vector<1x128xf32>
    %188 = math.tanh %187 : vector<1x128xf32>
    %189 = arith.mulf %184, %188 : vector<1x128xf32>
    %190 = arith.truncf %189 : vector<1x128xf32> to vector<1x128xbf16>
    %191 = vector.extract_strided_slice %11 {offsets = [4, 0], sizes = [1, 128], strides = [1, 1]} : vector<8x512xf32> to vector<1x128xf32>
    %c0_91 = arith.constant 0 : index
    %c0_92 = arith.constant 0 : index
    %192 = vector.load %arg2[%c0_91, %c0_92] : memref<128x128xbf16, #tpu.memory_space<vmem>>, vector<128x128xbf16>
    %cst_93 = arith.constant dense<0.000000e+00> : vector<1x128xf32>
    %193 = tpu.matmul %190, %192, %cst_93 {dimension_numbers = #tpu.dot_dimension_numbers<[1], [0], [0], [1], [0, 0, 1, 1], [], []>} : vector<1x128xbf16>, vector<128x128xbf16>, vector<1x128xf32> -> vector<1x128xf32>
    %194 = arith.addf %191, %193 : vector<1x128xf32>
    %195 = vector.extract_strided_slice %11 {offsets = [4, 128], sizes = [1, 128], strides = [1, 1]} : vector<8x512xf32> to vector<1x128xf32>
    %c0_94 = arith.constant 0 : index
    %c0_95 = arith.constant 0 : index
    %196 = vector.load %arg3[%c0_94, %c0_95] : memref<128x128xbf16, #tpu.memory_space<vmem>>, vector<128x128xbf16>
    %cst_96 = arith.constant dense<0.000000e+00> : vector<1x128xf32>
    %197 = tpu.matmul %190, %196, %cst_96 {dimension_numbers = #tpu.dot_dimension_numbers<[1], [0], [0], [1], [0, 0, 1, 1], [], []>} : vector<1x128xbf16>, vector<128x128xbf16>, vector<1x128xf32> -> vector<1x128xf32>
    %198 = arith.addf %195, %197 : vector<1x128xf32>
    %199 = vector.extract_strided_slice %11 {offsets = [4, 256], sizes = [1, 128], strides = [1, 1]} : vector<8x512xf32> to vector<1x128xf32>
    %c0_97 = arith.constant 0 : index
    %c0_98 = arith.constant 0 : index
    %200 = vector.load %arg4[%c0_97, %c0_98] : memref<128x128xbf16, #tpu.memory_space<vmem>>, vector<128x128xbf16>
    %cst_99 = arith.constant dense<0.000000e+00> : vector<1x128xf32>
    %201 = tpu.matmul %190, %200, %cst_99 {dimension_numbers = #tpu.dot_dimension_numbers<[1], [0], [0], [1], [0, 0, 1, 1], [], []>} : vector<1x128xbf16>, vector<128x128xbf16>, vector<1x128xf32> -> vector<1x128xf32>
    %202 = arith.addf %199, %201 : vector<1x128xf32>
    %203 = vector.extract_strided_slice %11 {offsets = [4, 384], sizes = [1, 128], strides = [1, 1]} : vector<8x512xf32> to vector<1x128xf32>
    %c0_100 = arith.constant 0 : index
    %c0_101 = arith.constant 0 : index
    %204 = vector.load %arg5[%c0_100, %c0_101] : memref<128x128xbf16, #tpu.memory_space<vmem>>, vector<128x128xbf16>
    %cst_102 = arith.constant dense<0.000000e+00> : vector<1x128xf32>
    %205 = tpu.matmul %190, %204, %cst_102 {dimension_numbers = #tpu.dot_dimension_numbers<[1], [0], [0], [1], [0, 0, 1, 1], [], []>} : vector<1x128xbf16>, vector<128x128xbf16>, vector<1x128xf32> -> vector<1x128xf32>
    %206 = arith.addf %203, %205 : vector<1x128xf32>
    %cst_103 = arith.constant 5.000000e-01 : f32
    %207 = vector.broadcast %cst_103 : f32 to vector<1x128xf32>
    %208 = arith.mulf %207, %194 : vector<1x128xf32>
    %209 = math.tanh %208 : vector<1x128xf32>
    %cst_104 = arith.constant 5.000000e-01 : f32
    %210 = vector.broadcast %cst_104 : f32 to vector<1x128xf32>
    %211 = arith.mulf %210, %209 : vector<1x128xf32>
    %cst_105 = arith.constant 5.000000e-01 : f32
    %212 = vector.broadcast %cst_105 : f32 to vector<1x128xf32>
    %213 = arith.addf %211, %212 : vector<1x128xf32>
    %cst_106 = arith.constant 5.000000e-01 : f32
    %214 = vector.broadcast %cst_106 : f32 to vector<1x128xf32>
    %215 = arith.mulf %214, %198 : vector<1x128xf32>
    %216 = math.tanh %215 : vector<1x128xf32>
    %cst_107 = arith.constant 5.000000e-01 : f32
    %217 = vector.broadcast %cst_107 : f32 to vector<1x128xf32>
    %218 = arith.mulf %217, %216 : vector<1x128xf32>
    %cst_108 = arith.constant 5.000000e-01 : f32
    %219 = vector.broadcast %cst_108 : f32 to vector<1x128xf32>
    %220 = arith.addf %218, %219 : vector<1x128xf32>
    %221 = math.tanh %202 : vector<1x128xf32>
    %cst_109 = arith.constant 5.000000e-01 : f32
    %222 = vector.broadcast %cst_109 : f32 to vector<1x128xf32>
    %223 = arith.mulf %222, %206 : vector<1x128xf32>
    %224 = math.tanh %223 : vector<1x128xf32>
    %cst_110 = arith.constant 5.000000e-01 : f32
    %225 = vector.broadcast %cst_110 : f32 to vector<1x128xf32>
    %226 = arith.mulf %225, %224 : vector<1x128xf32>
    %cst_111 = arith.constant 5.000000e-01 : f32
    %227 = vector.broadcast %cst_111 : f32 to vector<1x128xf32>
    %228 = arith.addf %226, %227 : vector<1x128xf32>
    %229 = arith.mulf %220, %187 : vector<1x128xf32>
    %230 = arith.mulf %213, %221 : vector<1x128xf32>
    %231 = arith.addf %229, %230 : vector<1x128xf32>
    %232 = math.tanh %231 : vector<1x128xf32>
    %233 = arith.mulf %228, %232 : vector<1x128xf32>
    %234 = arith.truncf %233 : vector<1x128xf32> to vector<1x128xbf16>
    %235 = vector.extract_strided_slice %11 {offsets = [5, 0], sizes = [1, 128], strides = [1, 1]} : vector<8x512xf32> to vector<1x128xf32>
    %c0_112 = arith.constant 0 : index
    %c0_113 = arith.constant 0 : index
    %236 = vector.load %arg2[%c0_112, %c0_113] : memref<128x128xbf16, #tpu.memory_space<vmem>>, vector<128x128xbf16>
    %cst_114 = arith.constant dense<0.000000e+00> : vector<1x128xf32>
    %237 = tpu.matmul %234, %236, %cst_114 {dimension_numbers = #tpu.dot_dimension_numbers<[1], [0], [0], [1], [0, 0, 1, 1], [], []>} : vector<1x128xbf16>, vector<128x128xbf16>, vector<1x128xf32> -> vector<1x128xf32>
    %238 = arith.addf %235, %237 : vector<1x128xf32>
    %239 = vector.extract_strided_slice %11 {offsets = [5, 128], sizes = [1, 128], strides = [1, 1]} : vector<8x512xf32> to vector<1x128xf32>
    %c0_115 = arith.constant 0 : index
    %c0_116 = arith.constant 0 : index
    %240 = vector.load %arg3[%c0_115, %c0_116] : memref<128x128xbf16, #tpu.memory_space<vmem>>, vector<128x128xbf16>
    %cst_117 = arith.constant dense<0.000000e+00> : vector<1x128xf32>
    %241 = tpu.matmul %234, %240, %cst_117 {dimension_numbers = #tpu.dot_dimension_numbers<[1], [0], [0], [1], [0, 0, 1, 1], [], []>} : vector<1x128xbf16>, vector<128x128xbf16>, vector<1x128xf32> -> vector<1x128xf32>
    %242 = arith.addf %239, %241 : vector<1x128xf32>
    %243 = vector.extract_strided_slice %11 {offsets = [5, 256], sizes = [1, 128], strides = [1, 1]} : vector<8x512xf32> to vector<1x128xf32>
    %c0_118 = arith.constant 0 : index
    %c0_119 = arith.constant 0 : index
    %244 = vector.load %arg4[%c0_118, %c0_119] : memref<128x128xbf16, #tpu.memory_space<vmem>>, vector<128x128xbf16>
    %cst_120 = arith.constant dense<0.000000e+00> : vector<1x128xf32>
    %245 = tpu.matmul %234, %244, %cst_120 {dimension_numbers = #tpu.dot_dimension_numbers<[1], [0], [0], [1], [0, 0, 1, 1], [], []>} : vector<1x128xbf16>, vector<128x128xbf16>, vector<1x128xf32> -> vector<1x128xf32>
    %246 = arith.addf %243, %245 : vector<1x128xf32>
    %247 = vector.extract_strided_slice %11 {offsets = [5, 384], sizes = [1, 128], strides = [1, 1]} : vector<8x512xf32> to vector<1x128xf32>
    %c0_121 = arith.constant 0 : index
    %c0_122 = arith.constant 0 : index
    %248 = vector.load %arg5[%c0_121, %c0_122] : memref<128x128xbf16, #tpu.memory_space<vmem>>, vector<128x128xbf16>
    %cst_123 = arith.constant dense<0.000000e+00> : vector<1x128xf32>
    %249 = tpu.matmul %234, %248, %cst_123 {dimension_numbers = #tpu.dot_dimension_numbers<[1], [0], [0], [1], [0, 0, 1, 1], [], []>} : vector<1x128xbf16>, vector<128x128xbf16>, vector<1x128xf32> -> vector<1x128xf32>
    %250 = arith.addf %247, %249 : vector<1x128xf32>
    %cst_124 = arith.constant 5.000000e-01 : f32
    %251 = vector.broadcast %cst_124 : f32 to vector<1x128xf32>
    %252 = arith.mulf %251, %238 : vector<1x128xf32>
    %253 = math.tanh %252 : vector<1x128xf32>
    %cst_125 = arith.constant 5.000000e-01 : f32
    %254 = vector.broadcast %cst_125 : f32 to vector<1x128xf32>
    %255 = arith.mulf %254, %253 : vector<1x128xf32>
    %cst_126 = arith.constant 5.000000e-01 : f32
    %256 = vector.broadcast %cst_126 : f32 to vector<1x128xf32>
    %257 = arith.addf %255, %256 : vector<1x128xf32>
    %cst_127 = arith.constant 5.000000e-01 : f32
    %258 = vector.broadcast %cst_127 : f32 to vector<1x128xf32>
    %259 = arith.mulf %258, %242 : vector<1x128xf32>
    %260 = math.tanh %259 : vector<1x128xf32>
    %cst_128 = arith.constant 5.000000e-01 : f32
    %261 = vector.broadcast %cst_128 : f32 to vector<1x128xf32>
    %262 = arith.mulf %261, %260 : vector<1x128xf32>
    %cst_129 = arith.constant 5.000000e-01 : f32
    %263 = vector.broadcast %cst_129 : f32 to vector<1x128xf32>
    %264 = arith.addf %262, %263 : vector<1x128xf32>
    %265 = math.tanh %246 : vector<1x128xf32>
    %cst_130 = arith.constant 5.000000e-01 : f32
    %266 = vector.broadcast %cst_130 : f32 to vector<1x128xf32>
    %267 = arith.mulf %266, %250 : vector<1x128xf32>
    %268 = math.tanh %267 : vector<1x128xf32>
    %cst_131 = arith.constant 5.000000e-01 : f32
    %269 = vector.broadcast %cst_131 : f32 to vector<1x128xf32>
    %270 = arith.mulf %269, %268 : vector<1x128xf32>
    %cst_132 = arith.constant 5.000000e-01 : f32
    %271 = vector.broadcast %cst_132 : f32 to vector<1x128xf32>
    %272 = arith.addf %270, %271 : vector<1x128xf32>
    %273 = arith.mulf %264, %231 : vector<1x128xf32>
    %274 = arith.mulf %257, %265 : vector<1x128xf32>
    %275 = arith.addf %273, %274 : vector<1x128xf32>
    %276 = math.tanh %275 : vector<1x128xf32>
    %277 = arith.mulf %272, %276 : vector<1x128xf32>
    %278 = arith.truncf %277 : vector<1x128xf32> to vector<1x128xbf16>
    %279 = vector.extract_strided_slice %11 {offsets = [6, 0], sizes = [1, 128], strides = [1, 1]} : vector<8x512xf32> to vector<1x128xf32>
    %c0_133 = arith.constant 0 : index
    %c0_134 = arith.constant 0 : index
    %280 = vector.load %arg2[%c0_133, %c0_134] : memref<128x128xbf16, #tpu.memory_space<vmem>>, vector<128x128xbf16>
    %cst_135 = arith.constant dense<0.000000e+00> : vector<1x128xf32>
    %281 = tpu.matmul %278, %280, %cst_135 {dimension_numbers = #tpu.dot_dimension_numbers<[1], [0], [0], [1], [0, 0, 1, 1], [], []>} : vector<1x128xbf16>, vector<128x128xbf16>, vector<1x128xf32> -> vector<1x128xf32>
    %282 = arith.addf %279, %281 : vector<1x128xf32>
    %283 = vector.extract_strided_slice %11 {offsets = [6, 128], sizes = [1, 128], strides = [1, 1]} : vector<8x512xf32> to vector<1x128xf32>
    %c0_136 = arith.constant 0 : index
    %c0_137 = arith.constant 0 : index
    %284 = vector.load %arg3[%c0_136, %c0_137] : memref<128x128xbf16, #tpu.memory_space<vmem>>, vector<128x128xbf16>
    %cst_138 = arith.constant dense<0.000000e+00> : vector<1x128xf32>
    %285 = tpu.matmul %278, %284, %cst_138 {dimension_numbers = #tpu.dot_dimension_numbers<[1], [0], [0], [1], [0, 0, 1, 1], [], []>} : vector<1x128xbf16>, vector<128x128xbf16>, vector<1x128xf32> -> vector<1x128xf32>
    %286 = arith.addf %283, %285 : vector<1x128xf32>
    %287 = vector.extract_strided_slice %11 {offsets = [6, 256], sizes = [1, 128], strides = [1, 1]} : vector<8x512xf32> to vector<1x128xf32>
    %c0_139 = arith.constant 0 : index
    %c0_140 = arith.constant 0 : index
    %288 = vector.load %arg4[%c0_139, %c0_140] : memref<128x128xbf16, #tpu.memory_space<vmem>>, vector<128x128xbf16>
    %cst_141 = arith.constant dense<0.000000e+00> : vector<1x128xf32>
    %289 = tpu.matmul %278, %288, %cst_141 {dimension_numbers = #tpu.dot_dimension_numbers<[1], [0], [0], [1], [0, 0, 1, 1], [], []>} : vector<1x128xbf16>, vector<128x128xbf16>, vector<1x128xf32> -> vector<1x128xf32>
    %290 = arith.addf %287, %289 : vector<1x128xf32>
    %291 = vector.extract_strided_slice %11 {offsets = [6, 384], sizes = [1, 128], strides = [1, 1]} : vector<8x512xf32> to vector<1x128xf32>
    %c0_142 = arith.constant 0 : index
    %c0_143 = arith.constant 0 : index
    %292 = vector.load %arg5[%c0_142, %c0_143] : memref<128x128xbf16, #tpu.memory_space<vmem>>, vector<128x128xbf16>
    %cst_144 = arith.constant dense<0.000000e+00> : vector<1x128xf32>
    %293 = tpu.matmul %278, %292, %cst_144 {dimension_numbers = #tpu.dot_dimension_numbers<[1], [0], [0], [1], [0, 0, 1, 1], [], []>} : vector<1x128xbf16>, vector<128x128xbf16>, vector<1x128xf32> -> vector<1x128xf32>
    %294 = arith.addf %291, %293 : vector<1x128xf32>
    %cst_145 = arith.constant 5.000000e-01 : f32
    %295 = vector.broadcast %cst_145 : f32 to vector<1x128xf32>
    %296 = arith.mulf %295, %282 : vector<1x128xf32>
    %297 = math.tanh %296 : vector<1x128xf32>
    %cst_146 = arith.constant 5.000000e-01 : f32
    %298 = vector.broadcast %cst_146 : f32 to vector<1x128xf32>
    %299 = arith.mulf %298, %297 : vector<1x128xf32>
    %cst_147 = arith.constant 5.000000e-01 : f32
    %300 = vector.broadcast %cst_147 : f32 to vector<1x128xf32>
    %301 = arith.addf %299, %300 : vector<1x128xf32>
    %cst_148 = arith.constant 5.000000e-01 : f32
    %302 = vector.broadcast %cst_148 : f32 to vector<1x128xf32>
    %303 = arith.mulf %302, %286 : vector<1x128xf32>
    %304 = math.tanh %303 : vector<1x128xf32>
    %cst_149 = arith.constant 5.000000e-01 : f32
    %305 = vector.broadcast %cst_149 : f32 to vector<1x128xf32>
    %306 = arith.mulf %305, %304 : vector<1x128xf32>
    %cst_150 = arith.constant 5.000000e-01 : f32
    %307 = vector.broadcast %cst_150 : f32 to vector<1x128xf32>
    %308 = arith.addf %306, %307 : vector<1x128xf32>
    %309 = math.tanh %290 : vector<1x128xf32>
    %cst_151 = arith.constant 5.000000e-01 : f32
    %310 = vector.broadcast %cst_151 : f32 to vector<1x128xf32>
    %311 = arith.mulf %310, %294 : vector<1x128xf32>
    %312 = math.tanh %311 : vector<1x128xf32>
    %cst_152 = arith.constant 5.000000e-01 : f32
    %313 = vector.broadcast %cst_152 : f32 to vector<1x128xf32>
    %314 = arith.mulf %313, %312 : vector<1x128xf32>
    %cst_153 = arith.constant 5.000000e-01 : f32
    %315 = vector.broadcast %cst_153 : f32 to vector<1x128xf32>
    %316 = arith.addf %314, %315 : vector<1x128xf32>
    %317 = arith.mulf %308, %275 : vector<1x128xf32>
    %318 = arith.mulf %301, %309 : vector<1x128xf32>
    %319 = arith.addf %317, %318 : vector<1x128xf32>
    %320 = math.tanh %319 : vector<1x128xf32>
    %321 = arith.mulf %316, %320 : vector<1x128xf32>
    %322 = arith.truncf %321 : vector<1x128xf32> to vector<1x128xbf16>
    %323 = vector.extract_strided_slice %11 {offsets = [7, 0], sizes = [1, 128], strides = [1, 1]} : vector<8x512xf32> to vector<1x128xf32>
    %c0_154 = arith.constant 0 : index
    %c0_155 = arith.constant 0 : index
    %324 = vector.load %arg2[%c0_154, %c0_155] : memref<128x128xbf16, #tpu.memory_space<vmem>>, vector<128x128xbf16>
    %cst_156 = arith.constant dense<0.000000e+00> : vector<1x128xf32>
    %325 = tpu.matmul %322, %324, %cst_156 {dimension_numbers = #tpu.dot_dimension_numbers<[1], [0], [0], [1], [0, 0, 1, 1], [], []>} : vector<1x128xbf16>, vector<128x128xbf16>, vector<1x128xf32> -> vector<1x128xf32>
    %326 = arith.addf %323, %325 : vector<1x128xf32>
    %327 = vector.extract_strided_slice %11 {offsets = [7, 128], sizes = [1, 128], strides = [1, 1]} : vector<8x512xf32> to vector<1x128xf32>
    %c0_157 = arith.constant 0 : index
    %c0_158 = arith.constant 0 : index
    %328 = vector.load %arg3[%c0_157, %c0_158] : memref<128x128xbf16, #tpu.memory_space<vmem>>, vector<128x128xbf16>
    %cst_159 = arith.constant dense<0.000000e+00> : vector<1x128xf32>
    %329 = tpu.matmul %322, %328, %cst_159 {dimension_numbers = #tpu.dot_dimension_numbers<[1], [0], [0], [1], [0, 0, 1, 1], [], []>} : vector<1x128xbf16>, vector<128x128xbf16>, vector<1x128xf32> -> vector<1x128xf32>
    %330 = arith.addf %327, %329 : vector<1x128xf32>
    %331 = vector.extract_strided_slice %11 {offsets = [7, 256], sizes = [1, 128], strides = [1, 1]} : vector<8x512xf32> to vector<1x128xf32>
    %c0_160 = arith.constant 0 : index
    %c0_161 = arith.constant 0 : index
    %332 = vector.load %arg4[%c0_160, %c0_161] : memref<128x128xbf16, #tpu.memory_space<vmem>>, vector<128x128xbf16>
    %cst_162 = arith.constant dense<0.000000e+00> : vector<1x128xf32>
    %333 = tpu.matmul %322, %332, %cst_162 {dimension_numbers = #tpu.dot_dimension_numbers<[1], [0], [0], [1], [0, 0, 1, 1], [], []>} : vector<1x128xbf16>, vector<128x128xbf16>, vector<1x128xf32> -> vector<1x128xf32>
    %334 = arith.addf %331, %333 : vector<1x128xf32>
    %335 = vector.extract_strided_slice %11 {offsets = [7, 384], sizes = [1, 128], strides = [1, 1]} : vector<8x512xf32> to vector<1x128xf32>
    %c0_163 = arith.constant 0 : index
    %c0_164 = arith.constant 0 : index
    %336 = vector.load %arg5[%c0_163, %c0_164] : memref<128x128xbf16, #tpu.memory_space<vmem>>, vector<128x128xbf16>
    %cst_165 = arith.constant dense<0.000000e+00> : vector<1x128xf32>
    %337 = tpu.matmul %322, %336, %cst_165 {dimension_numbers = #tpu.dot_dimension_numbers<[1], [0], [0], [1], [0, 0, 1, 1], [], []>} : vector<1x128xbf16>, vector<128x128xbf16>, vector<1x128xf32> -> vector<1x128xf32>
    %338 = arith.addf %335, %337 : vector<1x128xf32>
    %cst_166 = arith.constant 5.000000e-01 : f32
    %339 = vector.broadcast %cst_166 : f32 to vector<1x128xf32>
    %340 = arith.mulf %339, %326 : vector<1x128xf32>
    %341 = math.tanh %340 : vector<1x128xf32>
    %cst_167 = arith.constant 5.000000e-01 : f32
    %342 = vector.broadcast %cst_167 : f32 to vector<1x128xf32>
    %343 = arith.mulf %342, %341 : vector<1x128xf32>
    %cst_168 = arith.constant 5.000000e-01 : f32
    %344 = vector.broadcast %cst_168 : f32 to vector<1x128xf32>
    %345 = arith.addf %343, %344 : vector<1x128xf32>
    %cst_169 = arith.constant 5.000000e-01 : f32
    %346 = vector.broadcast %cst_169 : f32 to vector<1x128xf32>
    %347 = arith.mulf %346, %330 : vector<1x128xf32>
    %348 = math.tanh %347 : vector<1x128xf32>
    %cst_170 = arith.constant 5.000000e-01 : f32
    %349 = vector.broadcast %cst_170 : f32 to vector<1x128xf32>
    %350 = arith.mulf %349, %348 : vector<1x128xf32>
    %cst_171 = arith.constant 5.000000e-01 : f32
    %351 = vector.broadcast %cst_171 : f32 to vector<1x128xf32>
    %352 = arith.addf %350, %351 : vector<1x128xf32>
    %353 = math.tanh %334 : vector<1x128xf32>
    %cst_172 = arith.constant 5.000000e-01 : f32
    %354 = vector.broadcast %cst_172 : f32 to vector<1x128xf32>
    %355 = arith.mulf %354, %338 : vector<1x128xf32>
    %356 = math.tanh %355 : vector<1x128xf32>
    %cst_173 = arith.constant 5.000000e-01 : f32
    %357 = vector.broadcast %cst_173 : f32 to vector<1x128xf32>
    %358 = arith.mulf %357, %356 : vector<1x128xf32>
    %cst_174 = arith.constant 5.000000e-01 : f32
    %359 = vector.broadcast %cst_174 : f32 to vector<1x128xf32>
    %360 = arith.addf %358, %359 : vector<1x128xf32>
    %361 = arith.mulf %352, %319 : vector<1x128xf32>
    %362 = arith.mulf %345, %353 : vector<1x128xf32>
    %363 = arith.addf %361, %362 : vector<1x128xf32>
    %364 = math.tanh %363 : vector<1x128xf32>
    %365 = arith.mulf %360, %364 : vector<1x128xf32>
    %366 = arith.truncf %365 : vector<1x128xf32> to vector<1x128xbf16>
    %c0_175 = arith.constant 0 : index
    %c0_176 = arith.constant 0 : index
    %367 = vector.load %arg7[%c0_175, %c0_176] : memref<128x128xbf16, #tpu.memory_space<vmem>>, vector<128x128xbf16>
    %cst_177 = arith.constant dense<0.000000e+00> : vector<1x128xf32>
    %368 = tpu.matmul %366, %367, %cst_177 {dimension_numbers = #tpu.dot_dimension_numbers<[1], [0], [0], [1], [0, 0, 1, 1], [], []>} : vector<1x128xbf16>, vector<128x128xbf16>, vector<1x128xf32> -> vector<1x128xf32>
    %c0_178 = arith.constant 0 : index
    %c0_179 = arith.constant 0 : index
    %369 = vector.load %arg8[%c0_178, %c0_179] : memref<1x128xf32, #tpu.memory_space<vmem>>, vector<1x128xf32>
    %370 = arith.addf %368, %369 : vector<1x128xf32>
    %cst_180 = arith.constant 5.000000e-01 : f32
    %371 = vector.broadcast %cst_180 : f32 to vector<1x128xf32>
    %372 = arith.mulf %371, %370 : vector<1x128xf32>
    %373 = math.tanh %372 : vector<1x128xf32>
    %cst_181 = arith.constant 5.000000e-01 : f32
    %374 = vector.broadcast %cst_181 : f32 to vector<1x128xf32>
    %375 = arith.mulf %374, %373 : vector<1x128xf32>
    %cst_182 = arith.constant 5.000000e-01 : f32
    %376 = vector.broadcast %cst_182 : f32 to vector<1x128xf32>
    %377 = arith.addf %375, %376 : vector<1x128xf32>
    %c0_183 = arith.constant 0 : index
    %c0_184 = arith.constant 0 : index
    %378 = vector.load %arg9[%c0_183, %c0_184] : memref<1x128xf32, #tpu.memory_space<vmem>>, vector<1x128xf32>
    tpu.vector_store %arg9[%c0_183, %c0_184], %377 {strides = array<i32>} : memref<1x128xf32, #tpu.memory_space<vmem>>, vector<1x128xf32>,
    return
  }
}

</mosaic_0001>

<llo_original>
// kernel: tgen_sem_classifier_forward.1
$region0: #{tgen_sem_classifier_forward.1}
  #allocation0 [shape = 'u32[]', space=smem, size = 0x4, offset = 0x4, fixed_abs, tag = 'smem constant byte address 0x4 - core index']
  #allocation1 [shape = 'u32[144,128]{1,0:T(1,128)}', space=vmem, size = 0x12000, scoped, tag = 'internal scratch']
  %s0 = inlined_call_operand.vmem [shape: s32[8,1], index: 0, kind: input, shape index: {}]
  %s1 = inlined_call_operand.hbm [shape: bf16[30,512], index: 1, kind: input, shape index: {}]
  %s2 = inlined_call_operand.hbm [shape: bf16[128,128], index: 2, kind: input, shape index: {}]
  %s3 = inlined_call_operand.hbm [shape: bf16[128,128], index: 3, kind: input, shape index: {}]
  %s4 = inlined_call_operand.hbm [shape: bf16[128,128], index: 4, kind: input, shape index: {}]
  %s5 = inlined_call_operand.hbm [shape: bf16[128,128], index: 5, kind: input, shape index: {}]
  %s6 = inlined_call_operand.vmem [shape: f32[1,512], index: 6, kind: input, shape index: {}]
  %s7 = inlined_call_operand.hbm [shape: bf16[128,128], index: 7, kind: input, shape index: {}]
  %s8 = inlined_call_operand.vmem [shape: f32[1,128], index: 8, kind: input, shape index: {}]
  %s9 = inlined_call_operand.vmem [shape: f32[1,128], index: 9, kind: output, shape index: {}]
  %s10 = sld [smem:[#allocation0]]
  $region70: #{tgen_sem_classifier_forward.1} parent=0
    _
  %s12 = ssub.s32 1, %s10
  %s13 = scalar_select 0, %s12, %s10
  $region1: #{tgen_sem_classifier_forward.1} parent=0
    #allocation2 [shape = 'u8[32768]{0}', space=vmem, size = 0x8000, scoped, tag = 'input window, operand 1, single buffered']
    #allocation3 [shape = 's32[1]{0}', space=sflag, size = 0x4, scoped, tag = 'scoped memory for tgen_sem_classifier_forward.1']
    #allocation4 [shape = 'u8[32768]{0}', space=vmem, size = 0x8000, scoped, tag = 'input window, operand 2, single buffered']
    #allocation5 [shape = 's32[1]{0}', space=sflag, size = 0x4, scoped, tag = 'scoped memory for tgen_sem_classifier_forward.1']
    #allocation6 [shape = 'u8[32768]{0}', space=vmem, size = 0x8000, scoped, tag = 'input window, operand 3, single buffered']
    #allocation7 [shape = 'u8[32768]{0}', space=vmem, size = 0x8000, scoped, tag = 'input window, operand 4, single buffered']
    #allocation8 [shape = 's32[1]{0}', space=sflag, size = 0x4, scoped, tag = 'scoped memory for tgen_sem_classifier_forward.1']
    #allocation9 [shape = 'u8[32768]{0}', space=vmem, size = 0x8000, scoped, tag = 'input window, operand 5, single buffered']
    #allocation10 [shape = 'u8[32768]{0}', space=vmem, size = 0x8000, scoped, tag = 'input window, operand 7, single buffered']
    #allocation11 [shape = 's32[1]{0}', space=sflag, size = 0x4, scoped, tag = 'scoped memory for tgen_sem_classifier_forward.1']
    %14 = vsyncpa [#allocation3], 0
    %15 = vsyncpa [#allocation5], 0
    %16 = vsyncpa [#allocation8], 0
    %17 = vsyncpa [#allocation11], 0
    // Predicated region
    $region2: #{tgen_sem_classifier_forward.1} parent=1 // pred_check
      _
    $region3: #{tgen_sem_classifier_forward.1} parent=1 // pred_check_branch
      %19 = sbr.rel (0) target = $region5
    $region4: #{tgen_sem_classifier_forward.1} parent=1 // pred_region
      _
    $region5: #{tgen_sem_classifier_forward.1} parent=1 // pred_fallthru
      _
    // Predicated region
    $region6: #{tgen_sem_classifier_forward.1} parent=1 // pred_check
      _
    $region7: #{tgen_sem_classifier_forward.1} parent=1 // pred_check_branch
      %21 = sbr.rel (0) target = $region9
    $region8: #{tgen_sem_classifier_forward.1} parent=1 // pred_region
      %s23 = ssub.s32 1024, 1024
      %24 = vsyncadd [#allocation3], %s23
      %s25 = sshll.u32 [#allocation2], 4
      %s26 = int_to_ptr.vmem [resolvable:$true] %s25
      %31 = dma.hbm_to_vmem [thread:$0]  %s1, 1024, %s26, [#allocation3], 256, 256, 16
    $region9: #{tgen_sem_classifier_forward.1} parent=1 // pred_fallthru
      _
    // Predicated region
    $region10: #{tgen_sem_classifier_forward.1} parent=1 // pred_check
      _
    $region11: #{tgen_sem_classifier_forward.1} parent=1 // pred_check_branch
      %33 = sbr.rel (0) target = $region13
    $region12: #{tgen_sem_classifier_forward.1} parent=1 // pred_region
      %s35 = ssub.s32 1024, 1024
      %36 = vsyncadd [#allocation5], %s35
      %s37 = sshll.u32 [#allocation4], 4
      %s38 = int_to_ptr.vmem [resolvable:$true] %s37
      %43 = dma.hbm_to_vmem [thread:$0]  %s2, 1024, %s38, [#allocation5], 64, 64, 4
    $region13: #{tgen_sem_classifier_forward.1} parent=1 // pred_fallthru
      _
    // Predicated region
    $region14: #{tgen_sem_classifier_forward.1} parent=1 // pred_check
      _
    $region15: #{tgen_sem_classifier_forward.1} parent=1 // pred_check_branch
      %45 = sbr.rel (0) target = $region17
    $region16: #{tgen_sem_classifier_forward.1} parent=1 // pred_region
      %s47 = ssub.s32 1024, 1024
      %48 = vsyncadd [#allocation5], %s47
      %s49 = sshll.u32 [#allocation6], 4
      %s50 = int_to_ptr.vmem [resolvable:$true] %s49
      %55 = dma.hbm_to_vmem [thread:$0]  %s3, 1024, %s50, [#allocation5], 64, 64, 4
    $region17: #{tgen_sem_classifier_forward.1} parent=1 // pred_fallthru
      _
    // Predicated region
    $region18: #{tgen_sem_classifier_forward.1} parent=1 // pred_check
      _
    $region19: #{tgen_sem_classifier_forward.1} parent=1 // pred_check_branch
      %57 = sbr.rel (0) target = $region21
    $region20: #{tgen_sem_classifier_forward.1} parent=1 // pred_region
      %s59 = ssub.s32 1024, 1024
      %60 = vsyncadd [#allocation8], %s59
      %s61 = sshll.u32 [#allocation7], 4
      %s62 = int_to_ptr.vmem [resolvable:$true] %s61
      %67 = dma.hbm_to_vmem [thread:$0]  %s4, 1024, %s62, [#allocation8], 64, 64, 4
    $region21: #{tgen_sem_classifier_forward.1} parent=1 // pred_fallthru
      _
    // Predicated region
    $region22: #{tgen_sem_classifier_forward.1} parent=1 // pred_check
      _
    $region23: #{tgen_sem_classifier_forward.1} parent=1 // pred_check_branch
      %69 = sbr.rel (0) target = $region25
    $region24: #{tgen_sem_classifier_forward.1} parent=1 // pred_region
      %s71 = ssub.s32 1024, 1024
      %72 = vsyncadd [#allocation8], %s71
      %s73 = sshll.u32 [#allocation9], 4
      %s74 = int_to_ptr.vmem [resolvable:$true] %s73
      %79 = dma.hbm_to_vmem [thread:$0]  %s5, 1024, %s74, [#allocation8], 64, 64, 4
    $region25: #{tgen_sem_classifier_forward.1} parent=1 // pred_fallthru
      _
    // Predicated region
    $region26: #{tgen_sem_classifier_forward.1} parent=1 // pred_check
      _
    $region27: #{tgen_sem_classifier_forward.1} parent=1 // pred_check_branch
      %81 = sbr.rel (0) target = $region29
    $region28: #{tgen_sem_classifier_forward.1} parent=1 // pred_region
      _
    $region29: #{tgen_sem_classifier_forward.1} parent=1 // pred_fallthru
      _
    // Predicated region
    $region30: #{tgen_sem_classifier_forward.1} parent=1 // pred_check
      _
    $region31: #{tgen_sem_classifier_forward.1} parent=1 // pred_check_branch
      %83 = sbr.rel (0) target = $region33
    $region32: #{tgen_sem_classifier_forward.1} parent=1 // pred_region
      %s85 = ssub.s32 1024, 1024
      %86 = vsyncadd [#allocation11], %s85
      %s87 = sshll.u32 [#allocation10], 4
      %s88 = int_to_ptr.vmem [resolvable:$true] %s87
      %93 = dma.hbm_to_vmem [thread:$0]  %s7, 1024, %s88, [#allocation11], 64, 64, 4
    $region33: #{tgen_sem_classifier_forward.1} parent=1 // pred_fallthru
      _
    // Predicated region
    $region34: #{tgen_sem_classifier_forward.1} parent=1 // pred_check
      _
    $region35: #{tgen_sem_classifier_forward.1} parent=1 // pred_check_branch
      %95 = sbr.rel (0) target = $region37
    $region36: #{tgen_sem_classifier_forward.1} parent=1 // pred_region
      _
    $region37: #{tgen_sem_classifier_forward.1} parent=1 // pred_fallthru
      _
    // Predicated region
    $region38: #{tgen_sem_classifier_forward.1} parent=1 // pred_check
      _
    $region39: #{tgen_sem_classifier_forward.1} parent=1 // pred_check_branch
      %97 = sbr.rel (0) target = $region41
    $region40: #{tgen_sem_classifier_forward.1} parent=1 // pred_region
      %98 = dma.done [#allocation3], 1024
    $region41: #{tgen_sem_classifier_forward.1} parent=1 // pred_fallthru
      _
    // Predicated region
    $region42: #{tgen_sem_classifier_forward.1} parent=1 // pred_check
      _
    $region43: #{tgen_sem_classifier_forward.1} parent=1 // pred_check_branch
      %100 = sbr.rel (0) target = $region45
    $region44: #{tgen_sem_classifier_forward.1} parent=1 // pred_region
      %101 = dma.done [#allocation5], 1024
    $region45: #{tgen_sem_classifier_forward.1} parent=1 // pred_fallthru
      _
    // Predicated region
    $region46: #{tgen_sem_classifier_forward.1} parent=1 // pred_check
      _
    $region47: #{tgen_sem_classifier_forward.1} parent=1 // pred_check_branch
      %103 = sbr.rel (0) target = $region49
    $region48: #{tgen_sem_classifier_forward.1} parent=1 // pred_region
      %104 = dma.done [#allocation5], 1024
    $region49: #{tgen_sem_classifier_forward.1} parent=1 // pred_fallthru
      _
    // Predicated region
    $region50: #{tgen_sem_classifier_forward.1} parent=1 // pred_check
      _
    $region51: #{tgen_sem_classifier_forward.1} parent=1 // pred_check_branch
      %106 = sbr.rel (0) target = $region53
    $region52: #{tgen_sem_classifier_forward.1} parent=1 // pred_region
      %107 = dma.done [#allocation8], 1024
    $region53: #{tgen_sem_classifier_forward.1} parent=1 // pred_fallthru
      _
    // Predicated region
    $region54: #{tgen_sem_classifier_forward.1} parent=1 // pred_check
      _
    $region55: #{tgen_sem_classifier_forward.1} parent=1 // pred_check_branch
      %109 = sbr.rel (0) target = $region57
    $region56: #{tgen_sem_classifier_forward.1} parent=1 // pred_region
      %110 = dma.done [#allocation8], 1024
    $region57: #{tgen_sem_classifier_forward.1} parent=1 // pred_fallthru
      _
    // Predicated region
    $region58: #{tgen_sem_classifier_forward.1} parent=1 // pred_check
      _
    $region59: #{tgen_sem_classifier_forward.1} parent=1 // pred_check_branch
      %112 = sbr.rel (0) target = $region61
    $region60: #{tgen_sem_classifier_forward.1} parent=1 // pred_region
      %113 = dma.done [#allocation11], 1024
    $region61: #{tgen_sem_classifier_forward.1} parent=1 // pred_fallthru
      _
    %v115 = vld [vmem:[%s0] sm:$0xff]
    %v116 = vlaneseq
    %v117 = vand.u32 %v116, 127
    %118 = vset.pattern.permute.xlu0 0
    %119 = vperm.xlu0 %118, %v115
    %v120 = vpop.permute.xlu0 %119
    %vm121 = vcmp.eq.s32.totalorder %v120, %v117
    %v122 = vsel %vm121, 1, 0
    %v123 = vcvt.s32.f32 %v122
    %v124 = vpack.c.bf16 %v123, %v123
    %v125 = vld [vmem:[#allocation2] sm:$0xff]
    %v126 = vld [vmem:[#allocation2 + $0x8] sm:$0xff]
    %v127 = vld [vmem:[#allocation2 + $0x10] sm:$0xff]
    %v128 = vld [vmem:[#allocation2 + $0x18] sm:$0xff]
    %v129 = vld [vmem:[#allocation2 + $0x20] sm:$0xff]
    %v130 = vld [vmem:[#allocation2 + $0x28] sm:$0xff]
    %v131 = vld [vmem:[#allocation2 + $0x30] sm:$0x77]
    %v132 = vld [vmem:[#allocation2 + $0x38] sm:$0x77]
    %v133 = vld [vmem:[%s6] sm:$0xf]
    %v135 = vlaneseq
    %v136 = vshrl.u32 %v135, 7
    %v137 = vsub.s32 0, %v136
    %v138 = vrot.slane %v133, %v137
    %v139 = vlaneseq
    %v140 = vshrl.u32 %v139, 7
    %v141 = vsub.s32 1, %v140
    %v142 = vrot.slane %v133, %v141
    %v143 = vlaneseq
    %v144 = vshrl.u32 %v143, 7
    %v145 = vsub.s32 2, %v144
    %v146 = vrot.slane %v133, %v145
    %v147 = vlaneseq
    %v148 = vshrl.u32 %v147, 7
    %v149 = vsub.s32 3, %v148
    %v150 = vrot.slane %v133, %v149
    %v163 = vunpack.c.l.b16 %v125
    %v164 = vunpack.c.h.b16 %v125
    %v165 = vunpack.c.l.b16 %v126
    %v166 = vunpack.c.h.b16 %v126
    %v167 = vunpack.c.l.b16 %v127
    %v168 = vunpack.c.h.b16 %v127
    %v169 = vunpack.c.l.b16 %v128
    %v170 = vunpack.c.h.b16 %v128
    %v171 = vunpack.c.l.b16 %v129
    %v172 = vunpack.c.h.b16 %v129
    %v173 = vunpack.c.l.b16 %v130
    %v174 = vunpack.c.h.b16 %v130
    %v175 = vunpack.c.l.b16 %v131
    %v176 = vunpack.c.h.b16 %v131
    %v177 = vunpack.c.l.b16 %v132
    %v178 = vunpack.c.h.b16 %v132
    %v179 = vpack.c.b16 %v167, %v163
    %v180 = vpack.c.b16 %v168, %v164
    %v181 = vpack.c.b16 %v169, %v165
    %v182 = vpack.c.b16 %v170, %v166
    %v183 = vpack.c.b16 %v175, %v171
    %v184 = vpack.c.b16 %v176, %v172
    %v185 = vpack.c.b16 %v177, %v173
    %v186 = vpack.c.b16 %v178, %v174
    %vm191 = vcmask 244736
    %v193 = vsel %vm191, %v124, 0
    %vm195 = vcmask 1046528
    %v197 = vsel %vm195, %v183, 0
    %v200 = vsel %vm195, %v184, 0
    %v203 = vsel %vm195, %v185, 0
    %v206 = vsel %vm195, %v186, 0
    %208 = vmatprep.subr.bf16.mxu0 0
    %209 = vmatpush1.bf16.msra.mxu0 0
    %210 = vmatprep.subr.bf16.mxu0 0
    %211 = vmatpush1.bf16.msra.mxu0 0
    %212 = vmatprep.subr.bf16.mxu0 0
    %213 = vmatpush1.bf16.msra.mxu0 0
    %214 = vmatprep.subr.bf16.mxu0 0
    %215 = vmatpush1.bf16.msra.mxu0 0
    %216 = vmatprep.subr.bf16.mxu0 0
    %217 = vmatpush1.bf16.msra.mxu0 0
    %218 = vmatprep.subr.bf16.mxu0 0
    %219 = vmatpush1.bf16.msra.mxu0 0
    %220 = vmatprep.subr.bf16.mxu0 %v200
    %221 = vmatpush1.bf16.msra.mxu0 %v197
    %222 = vmatprep.subr.bf16.mxu0 %v180
    %223 = vmatpush1.bf16.msra.mxu0 %v179
    %224 = vmatprep.subr.bf16.mxu0 0
    %225 = vmatpush2.bf16.msra.mxu0 0
    %226 = vmatprep.subr.bf16.mxu0 0
    %227 = vmatpush2.bf16.msra.mxu0 0
    %228 = vmatprep.subr.bf16.mxu0 0
    %229 = vmatpush2.bf16.msra.mxu0 0
    %230 = vmatprep.subr.bf16.mxu0 0
    %231 = vmatpush2.bf16.msra.mxu0 0
    %232 = vmatprep.subr.bf16.mxu0 0
    %233 = vmatpush2.bf16.msra.mxu0 0
    %234 = vmatprep.subr.bf16.mxu0 0
    %235 = vmatpush2.bf16.msra.mxu0 0
    %236 = vmatprep.subr.bf16.mxu0 0
    %237 = vmatpush2.bf16.msra.mxu0 0
    %238 = vmatprep.subr.bf16.mxu0 0
    %239 = vmatpush2.bf16.msra.mxu0 0
    %240 = vmatprep.mubr.bf16.mxu0 0
    %241 = vmatmul.mubr.bf16.gmra.mxu0 %v193
    %v242 = vpop.f32.mrf.mxu0
    %v243 = vadd.f32 %v138, %v242
    %v244 = vpop.f32.mrf.mxu0
    %v245 = vadd.f32 %v142, %v244
    %v246 = vpop.f32.mrf.mxu0
    %v247 = vpop.f32.mrf.mxu0
    %248 = vdwg.mxu0
    %249 = vmatprep.subr.bf16.mxu0 0
    %250 = vmatpush1.bf16.msra.mxu0 0
    %251 = vmatprep.subr.bf16.mxu0 0
    %252 = vmatpush1.bf16.msra.mxu0 0
    %253 = vmatprep.subr.bf16.mxu0 0
    %254 = vmatpush1.bf16.msra.mxu0 0
    %255 = vmatprep.subr.bf16.mxu0 0
    %256 = vmatpush1.bf16.msra.mxu0 0
    %257 = vmatprep.subr.bf16.mxu0 0
    %258 = vmatpush1.bf16.msra.mxu0 0
    %259 = vmatprep.subr.bf16.mxu0 0
    %260 = vmatpush1.bf16.msra.mxu0 0
    %261 = vmatprep.subr.bf16.mxu0 %v206
    %262 = vmatpush1.bf16.msra.mxu0 %v203
    %263 = vmatprep.subr.bf16.mxu0 %v182
    %264 = vmatpush1.bf16.msra.mxu0 %v181
    %265 = vmatprep.subr.bf16.mxu0 0
    %266 = vmatpush2.bf16.msra.mxu0 0
    %267 = vmatprep.subr.bf16.mxu0 0
    %268 = vmatpush2.bf16.msra.mxu0 0
    %269 = vmatprep.subr.bf16.mxu0 0
    %270 = vmatpush2.bf16.msra.mxu0 0
    %271 = vmatprep.subr.bf16.mxu0 0
    %272 = vmatpush2.bf16.msra.mxu0 0
    %273 = vmatprep.subr.bf16.mxu0 0
    %274 = vmatpush2.bf16.msra.mxu0 0
    %275 = vmatprep.subr.bf16.mxu0 0
    %276 = vmatpush2.bf16.msra.mxu0 0
    %277 = vmatprep.subr.bf16.mxu0 0
    %278 = vmatpush2.bf16.msra.mxu0 0
    %279 = vmatprep.subr.bf16.mxu0 0
    %280 = vmatpush2.bf16.msra.mxu0 0
    %281 = vmatprep.mubr.bf16.mxu0 0
    %282 = vmatmul.mubr.bf16.gmra.mxu0 %v193
    %v283 = vpop.f32.mrf.mxu0
    %v284 = vadd.f32 %v146, %v283
    %v285 = vpop.f32.mrf.mxu0
    %v286 = vadd.f32 %v150, %v285
    %v287 = vpop.f32.mrf.mxu0
    %v288 = vpop.f32.mrf.mxu0
    %289 = vdwg.mxu0
    %v290 = vld [vmem:[#allocation4] sm:$0xf]
    %v291 = vld [vmem:[#allocation4 + $0x4] sm:$0xf]
    %v292 = vld [vmem:[#allocation4 + $0x8] sm:$0xf]
    %v293 = vld [vmem:[#allocation4 + $0xc] sm:$0xf]
    %v294 = vld [vmem:[#allocation4 + $0x10] sm:$0xf]
    %v295 = vld [vmem:[#allocation4 + $0x14] sm:$0xf]
    %v296 = vld [vmem:[#allocation4 + $0x18] sm:$0xf]
    %v297 = vld [vmem:[#allocation4 + $0x1c] sm:$0xf]
    %v298 = vld [vmem:[#allocation4 + $0x20] sm:$0xf]
    %v299 = vld [vmem:[#allocation4 + $0x24] sm:$0xf]
    %v300 = vld [vmem:[#allocation4 + $0x28] sm:$0xf]
    %v301 = vld [vmem:[#allocation4 + $0x2c] sm:$0xf]
    %v302 = vld [vmem:[#allocation4 + $0x30] sm:$0xf]
    %v303 = vld [vmem:[#allocation4 + $0x34] sm:$0xf]
    %v304 = vld [vmem:[#allocation4 + $0x38] sm:$0xf]
    %v305 = vld [vmem:[#allocation4 + $0x3c] sm:$0xf]
    %v322 = vunpack.c.l.b16 %v290
    %v323 = vunpack.c.l.b16 %v291
    %v324 = vunpack.c.l.b16 %v292
    %v325 = vunpack.c.l.b16 %v293
    %v326 = vunpack.c.l.b16 %v294
    %v327 = vunpack.c.l.b16 %v295
    %v328 = vunpack.c.l.b16 %v296
    %v329 = vunpack.c.l.b16 %v297
    %v330 = vunpack.c.l.b16 %v298
    %v331 = vunpack.c.l.b16 %v299
    %v332 = vunpack.c.l.b16 %v300
    %v333 = vunpack.c.l.b16 %v301
    %v334 = vunpack.c.l.b16 %v302
    %v335 = vunpack.c.l.b16 %v303
    %v336 = vunpack.c.l.b16 %v304
    %v337 = vunpack.c.l.b16 %v305
    %v338 = vpack.c.b16 %v323, %v322
    %v339 = vpack.c.b16 %v325, %v324
    %v340 = vpack.c.b16 %v327, %v326
    %v341 = vpack.c.b16 %v329, %v328
    %v342 = vpack.c.b16 %v331, %v330
    %v343 = vpack.c.b16 %v333, %v332
    %v344 = vpack.c.b16 %v335, %v334
    %v345 = vpack.c.b16 %v337, %v336
    %354 = vmatprep.subr.bf16.mxu0 0
    %355 = vmatpush1.bf16.msra.mxu0 %v345
    %356 = vmatprep.subr.bf16.mxu0 0
    %357 = vmatpush1.bf16.msra.mxu0 %v344
    %358 = vmatprep.subr.bf16.mxu0 0
    %359 = vmatpush1.bf16.msra.mxu0 %v343
    %360 = vmatprep.subr.bf16.mxu0 0
    %361 = vmatpush1.bf16.msra.mxu0 %v342
    %362 = vmatprep.subr.bf16.mxu0 0
    %363 = vmatpush1.bf16.msra.mxu0 %v341
    %364 = vmatprep.subr.bf16.mxu0 0
    %365 = vmatpush1.bf16.msra.mxu0 %v340
    %366 = vmatprep.subr.bf16.mxu0 0
    %367 = vmatpush1.bf16.msra.mxu0 %v339
    %368 = vmatprep.subr.bf16.mxu0 0
    %369 = vmatpush1.bf16.msra.mxu0 %v338
    %370 = vmatprep.subr.bf16.mxu0 0
    %371 = vmatpush2.bf16.msra.mxu0 0
    %372 = vmatprep.subr.bf16.mxu0 0
    %373 = vmatpush2.bf16.msra.mxu0 0
    %374 = vmatprep.subr.bf16.mxu0 0
    %375 = vmatpush2.bf16.msra.mxu0 0
    %376 = vmatprep.subr.bf16.mxu0 0
    %377 = vmatpush2.bf16.msra.mxu0 0
    %378 = vmatprep.subr.bf16.mxu0 0
    %379 = vmatpush2.bf16.msra.mxu0 0
    %380 = vmatprep.subr.bf16.mxu0 0
    %381 = vmatpush2.bf16.msra.mxu0 0
    %382 = vmatprep.subr.bf16.mxu0 0
    %383 = vmatpush2.bf16.msra.mxu0 0
    %384 = vmatprep.subr.bf16.mxu0 0
    %385 = vmatpush2.bf16.msra.mxu0 0
    %386 = vmatprep.mubr.bf16.mxu0 0
    %387 = vmatmul.mubr.bf16.gmra.mxu0 0
    %v388 = vpop.f32.mrf.mxu0
    %v389 = vadd.f32 0.0, %v388
    %v390 = vpop.f32.mrf.mxu0
    %v391 = vpop.f32.mrf.mxu0
    %v392 = vpop.f32.mrf.mxu0
    %393 = vdwg.mxu0
    %v394 = vadd.f32 %v243, %v389
    %v395 = vld [vmem:[#allocation6] sm:$0xf]
    %v396 = vld [vmem:[#allocation6 + $0x4] sm:$0xf]
    %v397 = vld [vmem:[#allocation6 + $0x8] sm:$0xf]
    %v398 = vld [vmem:[#allocation6 + $0xc] sm:$0xf]
    %v399 = vld [vmem:[#allocation6 + $0x10] sm:$0xf]
    %v400 = vld [vmem:[#allocation6 + $0x14] sm:$0xf]
    %v401 = vld [vmem:[#allocation6 + $0x18] sm:$0xf]
    %v402 = vld [vmem:[#allocation6 + $0x1c] sm:$0xf]
    %v403 = vld [vmem:[#allocation6 + $0x20] sm:$0xf]
    %v404 = vld [vmem:[#allocation6 + $0x24] sm:$0xf]
    %v405 = vld [vmem:[#allocation6 + $0x28] sm:$0xf]
    %v406 = vld [vmem:[#allocation6 + $0x2c] sm:$0xf]
    %v407 = vld [vmem:[#allocation6 + $0x30] sm:$0xf]
    %v408 = vld [vmem:[#allocation6 + $0x34] sm:$0xf]
    %v409 = vld [vmem:[#allocation6 + $0x38] sm:$0xf]
    %v410 = vld [vmem:[#allocation6 + $0x3c] sm:$0xf]
    %v427 = vunpack.c.l.b16 %v395
    %v428 = vunpack.c.l.b16 %v396
    %v429 = vunpack.c.l.b16 %v397
    %v430 = vunpack.c.l.b16 %v398
    %v431 = vunpack.c.l.b16 %v399
    %v432 = vunpack.c.l.b16 %v400
    %v433 = vunpack.c.l.b16 %v401
    %v434 = vunpack.c.l.b16 %v402
    %v435 = vunpack.c.l.b16 %v403
    %v436 = vunpack.c.l.b16 %v404
    %v437 = vunpack.c.l.b16 %v405
    %v438 = vunpack.c.l.b16 %v406
    %v439 = vunpack.c.l.b16 %v407
    %v440 = vunpack.c.l.b16 %v408
    %v441 = vunpack.c.l.b16 %v409
    %v442 = vunpack.c.l.b16 %v410
    %v443 = vpack.c.b16 %v428, %v427
    %v444 = vpack.c.b16 %v430, %v429
    %v445 = vpack.c.b16 %v432, %v431
    %v446 = vpack.c.b16 %v434, %v433
    %v447 = vpack.c.b16 %v436, %v435
    %v448 = vpack.c.b16 %v438, %v437
    %v449 = vpack.c.b16 %v440, %v439
    %v450 = vpack.c.b16 %v442, %v441
    %459 = vmatprep.subr.bf16.mxu0 0
    %460 = vmatpush1.bf16.msra.mxu0 %v450
    %461 = vmatprep.subr.bf16.mxu0 0
    %462 = vmatpush1.bf16.msra.mxu0 %v449
    %463 = vmatprep.subr.bf16.mxu0 0
    %464 = vmatpush1.bf16.msra.mxu0 %v448
    %465 = vmatprep.subr.bf16.mxu0 0
    %466 = vmatpush1.bf16.msra.mxu0 %v447
    %467 = vmatprep.subr.bf16.mxu0 0
    %468 = vmatpush1.bf16.msra.mxu0 %v446
    %469 = vmatprep.subr.bf16.mxu0 0
    %470 = vmatpush1.bf16.msra.mxu0 %v445
    %471 = vmatprep.subr.bf16.mxu0 0
    %472 = vmatpush1.bf16.msra.mxu0 %v444
    %473 = vmatprep.subr.bf16.mxu0 0
    %474 = vmatpush1.bf16.msra.mxu0 %v443
    %475 = vmatprep.subr.bf16.mxu0 0
    %476 = vmatpush2.bf16.msra.mxu0 0
    %477 = vmatprep.subr.bf16.mxu0 0
    %478 = vmatpush2.bf16.msra.mxu0 0
    %479 = vmatprep.subr.bf16.mxu0 0
    %480 = vmatpush2.bf16.msra.mxu0 0
    %481 = vmatprep.subr.bf16.mxu0 0
    %482 = vmatpush2.bf16.msra.mxu0 0
    %483 = vmatprep.subr.bf16.mxu0 0
    %484 = vmatpush2.bf16.msra.mxu0 0
    %485 = vmatprep.subr.bf16.mxu0 0
    %486 = vmatpush2.bf16.msra.mxu0 0
    %487 = vmatprep.subr.bf16.mxu0 0
    %488 = vmatpush2.bf16.msra.mxu0 0
    %489 = vmatprep.subr.bf16.mxu0 0
    %490 = vmatpush2.bf16.msra.mxu0 0
    %491 = vmatprep.mubr.bf16.mxu0 0
    %492 = vmatmul.mubr.bf16.gmra.mxu0 0
    %v493 = vpop.f32.mrf.mxu0
    %v494 = vadd.f32 0.0, %v493
    %v495 = vpop.f32.mrf.mxu0
    %v496 = vpop.f32.mrf.mxu0
    %v497 = vpop.f32.mrf.mxu0
    %498 = vdwg.mxu0
    %v499 = vadd.f32 %v245, %v494
    %v500 = vld [vmem:[#allocation7] sm:$0xf]
    %v501 = vld [vmem:[#allocation7 + $0x4] sm:$0xf]
    %v502 = vld [vmem:[#allocation7 + $0x8] sm:$0xf]
    %v503 = vld [vmem:[#allocation7 + $0xc] sm:$0xf]
    %v504 = vld [vmem:[#allocation7 + $0x10] sm:$0xf]
    %v505 = vld [vmem:[#allocation7 + $0x14] sm:$0xf]
    %v506 = vld [vmem:[#allocation7 + $0x18] sm:$0xf]
    %v507 = vld [vmem:[#allocation7 + $0x1c] sm:$0xf]
    %v508 = vld [vmem:[#allocation7 + $0x20] sm:$0xf]
    %v509 = vld [vmem:[#allocation7 + $0x24] sm:$0xf]
    %v510 = vld [vmem:[#allocation7 + $0x28] sm:$0xf]
    %v511 = vld [vmem:[#allocation7 + $0x2c] sm:$0xf]
    %v512 = vld [vmem:[#allocation7 + $0x30] sm:$0xf]
    %v513 = vld [vmem:[#allocation7 + $0x34] sm:$0xf]
    %v514 = vld [vmem:[#allocation7 + $0x38] sm:$0xf]
    %v515 = vld [vmem:[#allocation7 + $0x3c] sm:$0xf]
    %v532 = vunpack.c.l.b16 %v500
    %v533 = vunpack.c.l.b16 %v501
    %v534 = vunpack.c.l.b16 %v502
    %v535 = vunpack.c.l.b16 %v503
    %v536 = vunpack.c.l.b16 %v504
    %v537 = vunpack.c.l.b16 %v505
    %v538 = vunpack.c.l.b16 %v506
    %v539 = vunpack.c.l.b16 %v507
    %v540 = vunpack.c.l.b16 %v508
    %v541 = vunpack.c.l.b16 %v509
    %v542 = vunpack.c.l.b16 %v510
    %v543 = vunpack.c.l.b16 %v511
    %v544 = vunpack.c.l.b16 %v512
    %v545 = vunpack.c.l.b16 %v513
    %v546 = vunpack.c.l.b16 %v514
    %v547 = vunpack.c.l.b16 %v515
    %v548 = vpack.c.b16 %v533, %v532
    %v549 = vpack.c.b16 %v535, %v534
    %v550 = vpack.c.b16 %v537, %v536
    %v551 = vpack.c.b16 %v539, %v538
    %v552 = vpack.c.b16 %v541, %v540
    %v553 = vpack.c.b16 %v543, %v542
    %v554 = vpack.c.b16 %v545, %v544
    %v555 = vpack.c.b16 %v547, %v546
    %564 = vmatprep.subr.bf16.mxu0 0
    %565 = vmatpush1.bf16.msra.mxu0 %v555
    %566 = vmatprep.subr.bf16.mxu0 0
    %567 = vmatpush1.bf16.msra.mxu0 %v554
    %568 = vmatprep.subr.bf16.mxu0 0
    %569 = vmatpush1.bf16.msra.mxu0 %v553
    %570 = vmatprep.subr.bf16.mxu0 0
    %571 = vmatpush1.bf16.msra.mxu0 %v552
    %572 = vmatprep.subr.bf16.mxu0 0
    %573 = vmatpush1.bf16.msra.mxu0 %v551
    %574 = vmatprep.subr.bf16.mxu0 0
    %575 = vmatpush1.bf16.msra.mxu0 %v550
    %576 = vmatprep.subr.bf16.mxu0 0
    %577 = vmatpush1.bf16.msra.mxu0 %v549
    %578 = vmatprep.subr.bf16.mxu0 0
    %579 = vmatpush1.bf16.msra.mxu0 %v548
    %580 = vmatprep.subr.bf16.mxu0 0
    %581 = vmatpush2.bf16.msra.mxu0 0
    %582 = vmatprep.subr.bf16.mxu0 0
    %583 = vmatpush2.bf16.msra.mxu0 0
    %584 = vmatprep.subr.bf16.mxu0 0
    %585 = vmatpush2.bf16.msra.mxu0 0
    %586 = vmatprep.subr.bf16.mxu0 0
    %587 = vmatpush2.bf16.msra.mxu0 0
    %588 = vmatprep.subr.bf16.mxu0 0
    %589 = vmatpush2.bf16.msra.mxu0 0
    %590 = vmatprep.subr.bf16.mxu0 0
    %591 = vmatpush2.bf16.msra.mxu0 0
    %592 = vmatprep.subr.bf16.mxu0 0
    %593 = vmatpush2.bf16.msra.mxu0 0
    %594 = vmatprep.subr.bf16.mxu0 0
    %595 = vmatpush2.bf16.msra.mxu0 0
    %596 = vmatprep.mubr.bf16.mxu0 0
    %597 = vmatmul.mubr.bf16.gmra.mxu0 0
    %v598 = vpop.f32.mrf.mxu0
    %v599 = vadd.f32 0.0, %v598
    %v600 = vpop.f32.mrf.mxu0
    %v601 = vpop.f32.mrf.mxu0
    %v602 = vpop.f32.mrf.mxu0
    %603 = vdwg.mxu0
    %v604 = vadd.f32 %v284, %v599
    %v605 = vld [vmem:[#allocation9] sm:$0xf]
    %v606 = vld [vmem:[#allocation9 + $0x4] sm:$0xf]
    %v607 = vld [vmem:[#allocation9 + $0x8] sm:$0xf]
    %v608 = vld [vmem:[#allocation9 + $0xc] sm:$0xf]
    %v609 = vld [vmem:[#allocation9 + $0x10] sm:$0xf]
    %v610 = vld [vmem:[#allocation9 + $0x14] sm:$0xf]
    %v611 = vld [vmem:[#allocation9 + $0x18] sm:$0xf]
    %v612 = vld [vmem:[#allocation9 + $0x1c] sm:$0xf]
    %v613 = vld [vmem:[#allocation9 + $0x20] sm:$0xf]
    %v614 = vld [vmem:[#allocation9 + $0x24] sm:$0xf]
    %v615 = vld [vmem:[#allocation9 + $0x28] sm:$0xf]
    %v616 = vld [vmem:[#allocation9 + $0x2c] sm:$0xf]
    %v617 = vld [vmem:[#allocation9 + $0x30] sm:$0xf]
    %v618 = vld [vmem:[#allocation9 + $0x34] sm:$0xf]
    %v619 = vld [vmem:[#allocation9 + $0x38] sm:$0xf]
    %v620 = vld [vmem:[#allocation9 + $0x3c] sm:$0xf]
    %v637 = vunpack.c.l.b16 %v605
    %v638 = vunpack.c.l.b16 %v606
    %v639 = vunpack.c.l.b16 %v607
    %v640 = vunpack.c.l.b16 %v608
    %v641 = vunpack.c.l.b16 %v609
    %v642 = vunpack.c.l.b16 %v610
    %v643 = vunpack.c.l.b16 %v611
    %v644 = vunpack.c.l.b16 %v612
    %v645 = vunpack.c.l.b16 %v613
    %v646 = vunpack.c.l.b16 %v614
    %v647 = vunpack.c.l.b16 %v615
    %v648 = vunpack.c.l.b16 %v616
    %v649 = vunpack.c.l.b16 %v617
    %v650 = vunpack.c.l.b16 %v618
    %v651 = vunpack.c.l.b16 %v619
    %v652 = vunpack.c.l.b16 %v620
    %v653 = vpack.c.b16 %v638, %v637
    %v654 = vpack.c.b16 %v640, %v639
    %v655 = vpack.c.b16 %v642, %v641
    %v656 = vpack.c.b16 %v644, %v643
    %v657 = vpack.c.b16 %v646, %v645
    %v658 = vpack.c.b16 %v648, %v647
    %v659 = vpack.c.b16 %v650, %v649
    %v660 = vpack.c.b16 %v652, %v651
    %669 = vmatprep.subr.bf16.mxu0 0
    %670 = vmatpush1.bf16.msra.mxu0 %v660
    %671 = vmatprep.subr.bf16.mxu0 0
    %672 = vmatpush1.bf16.msra.mxu0 %v659
    %673 = vmatprep.subr.bf16.mxu0 0
    %674 = vmatpush1.bf16.msra.mxu0 %v658
    %675 = vmatprep.subr.bf16.mxu0 0
    %676 = vmatpush1.bf16.msra.mxu0 %v657
    %677 = vmatprep.subr.bf16.mxu0 0
    %678 = vmatpush1.bf16.msra.mxu0 %v656
    %679 = vmatprep.subr.bf16.mxu0 0
    %680 = vmatpush1.bf16.msra.mxu0 %v655
    %681 = vmatprep.subr.bf16.mxu0 0
    %682 = vmatpush1.bf16.msra.mxu0 %v654
    %683 = vmatprep.subr.bf16.mxu0 0
    %684 = vmatpush1.bf16.msra.mxu0 %v653
    %685 = vmatprep.subr.bf16.mxu0 0
    %686 = vmatpush2.bf16.msra.mxu0 0
    %687 = vmatprep.subr.bf16.mxu0 0
    %688 = vmatpush2.bf16.msra.mxu0 0
    %689 = vmatprep.subr.bf16.mxu0 0
    %690 = vmatpush2.bf16.msra.mxu0 0
    %691 = vmatprep.subr.bf16.mxu0 0
    %692 = vmatpush2.bf16.msra.mxu0 0
    %693 = vmatprep.subr.bf16.mxu0 0
    %694 = vmatpush2.bf16.msra.mxu0 0
    %695 = vmatprep.subr.bf16.mxu0 0
    %696 = vmatpush2.bf16.msra.mxu0 0
    %697 = vmatprep.subr.bf16.mxu0 0
    %698 = vmatpush2.bf16.msra.mxu0 0
    %699 = vmatprep.subr.bf16.mxu0 0
    %700 = vmatpush2.bf16.msra.mxu0 0
    %701 = vmatprep.mubr.bf16.mxu0 0
    %702 = vmatmul.mubr.bf16.gmra.mxu0 0
    %v703 = vpop.f32.mrf.mxu0
    %v704 = vadd.f32 0.0, %v703
    %v705 = vpop.f32.mrf.mxu0
    %v706 = vpop.f32.mrf.mxu0
    %v707 = vpop.f32.mrf.mxu0
    %708 = vdwg.mxu0
    %v709 = vadd.f32 %v286, %v704
    %v710 = vmul.f32 %v394, 0.5
    %v711 = vtanh.pop %v710
    %v712 = vmul.f32 %v711, 0.5
    %v713 = vadd.f32 %v712, 0.5
    %v714 = vmul.f32 %v499, 0.5
    %v715 = vtanh.pop %v714
    %v716 = vmul.f32 %v715, 0.5
    %v717 = vadd.f32 %v716, 0.5
    %v718 = vtanh.pop %v604
    %v719 = vmul.f32 %v709, 0.5
    %v720 = vtanh.pop %v719
    %v721 = vmul.f32 %v720, 0.5
    %v722 = vadd.f32 %v721, 0.5
    %v723 = vmul.f32 %v717, 0.0
    %v724 = vmul.f32 %v713, %v718
    %v725 = vadd.f32 %v723, %v724
    %v726 = vtanh.pop %v725
    %v727 = vmul.f32 %v722, %v726
    %v728 = vpack.c.bf16 %v727, %v727
    %729 = vmatprep.subr.bf16.mxu0 0
    %730 = vmatpush1.bf16.msra.mxu0 %v345
    %731 = vmatprep.subr.bf16.mxu0 0
    %732 = vmatpush1.bf16.msra.mxu0 %v344
    %733 = vmatprep.subr.bf16.mxu0 0
    %734 = vmatpush1.bf16.msra.mxu0 %v343
    %735 = vmatprep.subr.bf16.mxu0 0
    %736 = vmatpush1.bf16.msra.mxu0 %v342
    %737 = vmatprep.subr.bf16.mxu0 0
    %738 = vmatpush1.bf16.msra.mxu0 %v341
    %739 = vmatprep.subr.bf16.mxu0 0
    %740 = vmatpush1.bf16.msra.mxu0 %v340
    %741 = vmatprep.subr.bf16.mxu0 0
    %742 = vmatpush1.bf16.msra.mxu0 %v339
    %743 = vmatprep.subr.bf16.mxu0 0
    %744 = vmatpush1.bf16.msra.mxu0 %v338
    %745 = vmatprep.subr.bf16.mxu0 0
    %746 = vmatpush2.bf16.msra.mxu0 0
    %747 = vmatprep.subr.bf16.mxu0 0
    %748 = vmatpush2.bf16.msra.mxu0 0
    %749 = vmatprep.subr.bf16.mxu0 0
    %750 = vmatpush2.bf16.msra.mxu0 0
    %751 = vmatprep.subr.bf16.mxu0 0
    %752 = vmatpush2.bf16.msra.mxu0 0
    %753 = vmatprep.subr.bf16.mxu0 0
    %754 = vmatpush2.bf16.msra.mxu0 0
    %755 = vmatprep.subr.bf16.mxu0 0
    %756 = vmatpush2.bf16.msra.mxu0 0
    %757 = vmatprep.subr.bf16.mxu0 0
    %758 = vmatpush2.bf16.msra.mxu0 0
    %759 = vmatprep.subr.bf16.mxu0 0
    %760 = vmatpush2.bf16.msra.mxu0 0
    %761 = vmatprep.mubr.bf16.mxu0 0
    %762 = vmatmul.mubr.bf16.gmra.mxu0 %v728
    %v763 = vpop.f32.mrf.mxu0
    %v764 = vadd.f32 0.0, %v763
    %v765 = vpop.f32.mrf.mxu0
    %v766 = vpop.f32.mrf.mxu0
    %v767 = vpop.f32.mrf.mxu0
    %768 = vdwg.mxu0
    %v770 = vrot.slane %v764, 7
    %v772 = vadd.f32 %v243, %v770
    %773 = vmatprep.subr.bf16.mxu0 0
    %774 = vmatpush1.bf16.msra.mxu0 %v450
    %775 = vmatprep.subr.bf16.mxu0 0
    %776 = vmatpush1.bf16.msra.mxu0 %v449
    %777 = vmatprep.subr.bf16.mxu0 0
    %778 = vmatpush1.bf16.msra.mxu0 %v448
    %779 = vmatprep.subr.bf16.mxu0 0
    %780 = vmatpush1.bf16.msra.mxu0 %v447
    %781 = vmatprep.subr.bf16.mxu0 0
    %782 = vmatpush1.bf16.msra.mxu0 %v446
    %783 = vmatprep.subr.bf16.mxu0 0
    %784 = vmatpush1.bf16.msra.mxu0 %v445
    %785 = vmatprep.subr.bf16.mxu0 0
    %786 = vmatpush1.bf16.msra.mxu0 %v444
    %787 = vmatprep.subr.bf16.mxu0 0
    %788 = vmatpush1.bf16.msra.mxu0 %v443
    %789 = vmatprep.subr.bf16.mxu0 0
    %790 = vmatpush2.bf16.msra.mxu0 0
    %791 = vmatprep.subr.bf16.mxu0 0
    %792 = vmatpush2.bf16.msra.mxu0 0
    %793 = vmatprep.subr.bf16.mxu0 0
    %794 = vmatpush2.bf16.msra.mxu0 0
    %795 = vmatprep.subr.bf16.mxu0 0
    %796 = vmatpush2.bf16.msra.mxu0 0
    %797 = vmatprep.subr.bf16.mxu0 0
    %798 = vmatpush2.bf16.msra.mxu0 0
    %799 = vmatprep.subr.bf16.mxu0 0
    %800 = vmatpush2.bf16.msra.mxu0 0
    %801 = vmatprep.subr.bf16.mxu0 0
    %802 = vmatpush2.bf16.msra.mxu0 0
    %803 = vmatprep.subr.bf16.mxu0 0
    %804 = vmatpush2.bf16.msra.mxu0 0
    %805 = vmatprep.mubr.bf16.mxu0 0
    %806 = vmatmul.mubr.bf16.gmra.mxu0 %v728
    %v807 = vpop.f32.mrf.mxu0
    %v808 = vadd.f32 0.0, %v807
    %v809 = vpop.f32.mrf.mxu0
    %v810 = vpop.f32.mrf.mxu0
    %v811 = vpop.f32.mrf.mxu0
    %812 = vdwg.mxu0
    %v814 = vrot.slane %v808, 7
    %v816 = vadd.f32 %v245, %v814
    %817 = vmatprep.subr.bf16.mxu0 0
    %818 = vmatpush1.bf16.msra.mxu0 %v555
    %819 = vmatprep.subr.bf16.mxu0 0
    %820 = vmatpush1.bf16.msra.mxu0 %v554
    %821 = vmatprep.subr.bf16.mxu0 0
    %822 = vmatpush1.bf16.msra.mxu0 %v553
    %823 = vmatprep.subr.bf16.mxu0 0
    %824 = vmatpush1.bf16.msra.mxu0 %v552
    %825 = vmatprep.subr.bf16.mxu0 0
    %826 = vmatpush1.bf16.msra.mxu0 %v551
    %827 = vmatprep.subr.bf16.mxu0 0
    %828 = vmatpush1.bf16.msra.mxu0 %v550
    %829 = vmatprep.subr.bf16.mxu0 0
    %830 = vmatpush1.bf16.msra.mxu0 %v549
    %831 = vmatprep.subr.bf16.mxu0 0
    %832 = vmatpush1.bf16.msra.mxu0 %v548
    %833 = vmatprep.subr.bf16.mxu0 0
    %834 = vmatpush2.bf16.msra.mxu0 0
    %835 = vmatprep.subr.bf16.mxu0 0
    %836 = vmatpush2.bf16.msra.mxu0 0
    %837 = vmatprep.subr.bf16.mxu0 0
    %838 = vmatpush2.bf16.msra.mxu0 0
    %839 = vmatprep.subr.bf16.mxu0 0
    %840 = vmatpush2.bf16.msra.mxu0 0
    %841 = vmatprep.subr.bf16.mxu0 0
    %842 = vmatpush2.bf16.msra.mxu0 0
    %843 = vmatprep.subr.bf16.mxu0 0
    %844 = vmatpush2.bf16.msra.mxu0 0
    %845 = vmatprep.subr.bf16.mxu0 0
    %846 = vmatpush2.bf16.msra.mxu0 0
    %847 = vmatprep.subr.bf16.mxu0 0
    %848 = vmatpush2.bf16.msra.mxu0 0
    %849 = vmatprep.mubr.bf16.mxu0 0
    %850 = vmatmul.mubr.bf16.gmra.mxu0 %v728
    %v851 = vpop.f32.mrf.mxu0
    %v852 = vadd.f32 0.0, %v851
    %v853 = vpop.f32.mrf.mxu0
    %v854 = vpop.f32.mrf.mxu0
    %v855 = vpop.f32.mrf.mxu0
    %856 = vdwg.mxu0
    %v858 = vrot.slane %v852, 7
    %v860 = vadd.f32 %v284, %v858
    %861 = vmatprep.subr.bf16.mxu0 0
    %862 = vmatpush1.bf16.msra.mxu0 %v660
    %863 = vmatprep.subr.bf16.mxu0 0
    %864 = vmatpush1.bf16.msra.mxu0 %v659
    %865 = vmatprep.subr.bf16.mxu0 0
    %866 = vmatpush1.bf16.msra.mxu0 %v658
    %867 = vmatprep.subr.bf16.mxu0 0
    %868 = vmatpush1.bf16.msra.mxu0 %v657
    %869 = vmatprep.subr.bf16.mxu0 0
    %870 = vmatpush1.bf16.msra.mxu0 %v656
    %871 = vmatprep.subr.bf16.mxu0 0
    %872 = vmatpush1.bf16.msra.mxu0 %v655
    %873 = vmatprep.subr.bf16.mxu0 0
    %874 = vmatpush1.bf16.msra.mxu0 %v654
    %875 = vmatprep.subr.bf16.mxu0 0
    %876 = vmatpush1.bf16.msra.mxu0 %v653
    %877 = vmatprep.subr.bf16.mxu0 0
    %878 = vmatpush2.bf16.msra.mxu0 0
    %879 = vmatprep.subr.bf16.mxu0 0
    %880 = vmatpush2.bf16.msra.mxu0 0
    %881 = vmatprep.subr.bf16.mxu0 0
    %882 = vmatpush2.bf16.msra.mxu0 0
    %883 = vmatprep.subr.bf16.mxu0 0
    %884 = vmatpush2.bf16.msra.mxu0 0
    %885 = vmatprep.subr.bf16.mxu0 0
    %886 = vmatpush2.bf16.msra.mxu0 0
    %887 = vmatprep.subr.bf16.mxu0 0
    %888 = vmatpush2.bf16.msra.mxu0 0
    %889 = vmatprep.subr.bf16.mxu0 0
    %890 = vmatpush2.bf16.msra.mxu0 0
    %891 = vmatprep.subr.bf16.mxu0 0
    %892 = vmatpush2.bf16.msra.mxu0 0
    %893 = vmatprep.mubr.bf16.mxu0 0
    %894 = vmatmul.mubr.bf16.gmra.mxu0 %v728
    %v895 = vpop.f32.mrf.mxu0
    %v896 = vadd.f32 0.0, %v895
    %v897 = vpop.f32.mrf.mxu0
    %v898 = vpop.f32.mrf.mxu0
    %v899 = vpop.f32.mrf.mxu0
    %900 = vdwg.mxu0
    %v902 = vrot.slane %v896, 7
    %v904 = vadd.f32 %v286, %v902
    %v905 = vmul.f32 %v772, 0.5
    %v906 = vtanh.pop %v905
    %v907 = vmul.f32 %v906, 0.5
    %v908 = vadd.f32 %v907, 0.5
    %v909 = vmul.f32 %v816, 0.5
    %v910 = vtanh.pop %v909
    %v911 = vmul.f32 %v910, 0.5
    %v912 = vadd.f32 %v911, 0.5
    %v913 = vtanh.pop %v860
    %v914 = vmul.f32 %v904, 0.5
    %v915 = vtanh.pop %v914
    %v916 = vmul.f32 %v915, 0.5
    %v917 = vadd.f32 %v916, 0.5
    %v919 = vrot.slane %v725, 7
    %v921 = vmul.f32 %v912, %v919
    %v922 = vmul.f32 %v908, %v913
    %v923 = vadd.f32 %v921, %v922
    %v924 = vtanh.pop %v923
    %v925 = vmul.f32 %v917, %v924
    %v926 = vpack.c.bf16 %v925, %v925
    %v928 = vshrl.u32 %v926, 16
    %931 = vmatprep.subr.bf16.mxu0 0
    %932 = vmatpush1.bf16.msra.mxu0 %v345
    %933 = vmatprep.subr.bf16.mxu0 0
    %934 = vmatpush1.bf16.msra.mxu0 %v344
    %935 = vmatprep.subr.bf16.mxu0 0
    %936 = vmatpush1.bf16.msra.mxu0 %v343
    %937 = vmatprep.subr.bf16.mxu0 0
    %938 = vmatpush1.bf16.msra.mxu0 %v342
    %939 = vmatprep.subr.bf16.mxu0 0
    %940 = vmatpush1.bf16.msra.mxu0 %v341
    %941 = vmatprep.subr.bf16.mxu0 0
    %942 = vmatpush1.bf16.msra.mxu0 %v340
    %943 = vmatprep.subr.bf16.mxu0 0
    %944 = vmatpush1.bf16.msra.mxu0 %v339
    %945 = vmatprep.subr.bf16.mxu0 0
    %946 = vmatpush1.bf16.msra.mxu0 %v338
    %947 = vmatprep.subr.bf16.mxu0 0
    %948 = vmatpush2.bf16.msra.mxu0 0
    %949 = vmatprep.subr.bf16.mxu0 0
    %950 = vmatpush2.bf16.msra.mxu0 0
    %951 = vmatprep.subr.bf16.mxu0 0
    %952 = vmatpush2.bf16.msra.mxu0 0
    %953 = vmatprep.subr.bf16.mxu0 0
    %954 = vmatpush2.bf16.msra.mxu0 0
    %955 = vmatprep.subr.bf16.mxu0 0
    %956 = vmatpush2.bf16.msra.mxu0 0
    %957 = vmatprep.subr.bf16.mxu0 0
    %958 = vmatpush2.bf16.msra.mxu0 0
    %959 = vmatprep.subr.bf16.mxu0 0
    %960 = vmatpush2.bf16.msra.mxu0 0
    %961 = vmatprep.subr.bf16.mxu0 0
    %962 = vmatpush2.bf16.msra.mxu0 0
    %963 = vmatprep.mubr.bf16.mxu0 0
    %964 = vmatmul.mubr.bf16.gmra.mxu0 %v928
    %v965 = vpop.f32.mrf.mxu0
    %v966 = vadd.f32 0.0, %v965
    %v967 = vpop.f32.mrf.mxu0
    %v968 = vpop.f32.mrf.mxu0
    %v969 = vpop.f32.mrf.mxu0
    %970 = vdwg.mxu0
    %v972 = vrot.slane %v966, 6
    %v974 = vadd.f32 %v243, %v972
    %975 = vmatprep.subr.bf16.mxu0 0
    %976 = vmatpush1.bf16.msra.mxu0 %v450
    %977 = vmatprep.subr.bf16.mxu0 0
    %978 = vmatpush1.bf16.msra.mxu0 %v449
    %979 = vmatprep.subr.bf16.mxu0 0
    %980 = vmatpush1.bf16.msra.mxu0 %v448
    %981 = vmatprep.subr.bf16.mxu0 0
    %982 = vmatpush1.bf16.msra.mxu0 %v447
    %983 = vmatprep.subr.bf16.mxu0 0
    %984 = vmatpush1.bf16.msra.mxu0 %v446
    %985 = vmatprep.subr.bf16.mxu0 0
    %986 = vmatpush1.bf16.msra.mxu0 %v445
    %987 = vmatprep.subr.bf16.mxu0 0
    %988 = vmatpush1.bf16.msra.mxu0 %v444
    %989 = vmatprep.subr.bf16.mxu0 0
    %990 = vmatpush1.bf16.msra.mxu0 %v443
    %991 = vmatprep.subr.bf16.mxu0 0
    %992 = vmatpush2.bf16.msra.mxu0 0
    %993 = vmatprep.subr.bf16.mxu0 0
    %994 = vmatpush2.bf16.msra.mxu0 0
    %995 = vmatprep.subr.bf16.mxu0 0
    %996 = vmatpush2.bf16.msra.mxu0 0
    %997 = vmatprep.subr.bf16.mxu0 0
    %998 = vmatpush2.bf16.msra.mxu0 0
    %999 = vmatprep.subr.bf16.mxu0 0
    %1000 = vmatpush2.bf16.msra.mxu0 0
    %1001 = vmatprep.subr.bf16.mxu0 0
    %1002 = vmatpush2.bf16.msra.mxu0 0
    %1003 = vmatprep.subr.bf16.mxu0 0
    %1004 = vmatpush2.bf16.msra.mxu0 0
    %1005 = vmatprep.subr.bf16.mxu0 0
    %1006 = vmatpush2.bf16.msra.mxu0 0
    %1007 = vmatprep.mubr.bf16.mxu0 0
    %1008 = vmatmul.mubr.bf16.gmra.mxu0 %v928
    %v1009 = vpop.f32.mrf.mxu0
    %v1010 = vadd.f32 0.0, %v1009
    %v1011 = vpop.f32.mrf.mxu0
    %v1012 = vpop.f32.mrf.mxu0
    %v1013 = vpop.f32.mrf.mxu0
    %1014 = vdwg.mxu0
    %v1016 = vrot.slane %v1010, 6
    %v1018 = vadd.f32 %v245, %v1016
    %1019 = vmatprep.subr.bf16.mxu0 0
    %1020 = vmatpush1.bf16.msra.mxu0 %v555
    %1021 = vmatprep.subr.bf16.mxu0 0
    %1022 = vmatpush1.bf16.msra.mxu0 %v554
    %1023 = vmatprep.subr.bf16.mxu0 0
    %1024 = vmatpush1.bf16.msra.mxu0 %v553
    %1025 = vmatprep.subr.bf16.mxu0 0
    %1026 = vmatpush1.bf16.msra.mxu0 %v552
    %1027 = vmatprep.subr.bf16.mxu0 0
    %1028 = vmatpush1.bf16.msra.mxu0 %v551
    %1029 = vmatprep.subr.bf16.mxu0 0
    %1030 = vmatpush1.bf16.msra.mxu0 %v550
    %1031 = vmatprep.subr.bf16.mxu0 0
    %1032 = vmatpush1.bf16.msra.mxu0 %v549
    %1033 = vmatprep.subr.bf16.mxu0 0
    %1034 = vmatpush1.bf16.msra.mxu0 %v548
    %1035 = vmatprep.subr.bf16.mxu0 0
    %1036 = vmatpush2.bf16.msra.mxu0 0
    %1037 = vmatprep.subr.bf16.mxu0 0
    %1038 = vmatpush2.bf16.msra.mxu0 0
    %1039 = vmatprep.subr.bf16.mxu0 0
    %1040 = vmatpush2.bf16.msra.mxu0 0
    %1041 = vmatprep.subr.bf16.mxu0 0
    %1042 = vmatpush2.bf16.msra.mxu0 0
    %1043 = vmatprep.subr.bf16.mxu0 0
    %1044 = vmatpush2.bf16.msra.mxu0 0
    %1045 = vmatprep.subr.bf16.mxu0 0
    %1046 = vmatpush2.bf16.msra.mxu0 0
    %1047 = vmatprep.subr.bf16.mxu0 0
    %1048 = vmatpush2.bf16.msra.mxu0 0
    %1049 = vmatprep.subr.bf16.mxu0 0
    %1050 = vmatpush2.bf16.msra.mxu0 0
    %1051 = vmatprep.mubr.bf16.mxu0 0
    %1052 = vmatmul.mubr.bf16.gmra.mxu0 %v928
    %v1053 = vpop.f32.mrf.mxu0
    %v1054 = vadd.f32 0.0, %v1053
    %v1055 = vpop.f32.mrf.mxu0
    %v1056 = vpop.f32.mrf.mxu0
    %v1057 = vpop.f32.mrf.mxu0
    %1058 = vdwg.mxu0
    %v1060 = vrot.slane %v1054, 6
    %v1062 = vadd.f32 %v284, %v1060
    %1063 = vmatprep.subr.bf16.mxu0 0
    %1064 = vmatpush1.bf16.msra.mxu0 %v660
    %1065 = vmatprep.subr.bf16.mxu0 0
    %1066 = vmatpush1.bf16.msra.mxu0 %v659
    %1067 = vmatprep.subr.bf16.mxu0 0
    %1068 = vmatpush1.bf16.msra.mxu0 %v658
    %1069 = vmatprep.subr.bf16.mxu0 0
    %1070 = vmatpush1.bf16.msra.mxu0 %v657
    %1071 = vmatprep.subr.bf16.mxu0 0
    %1072 = vmatpush1.bf16.msra.mxu0 %v656
    %1073 = vmatprep.subr.bf16.mxu0 0
    %1074 = vmatpush1.bf16.msra.mxu0 %v655
    %1075 = vmatprep.subr.bf16.mxu0 0
    %1076 = vmatpush1.bf16.msra.mxu0 %v654
    %1077 = vmatprep.subr.bf16.mxu0 0
    %1078 = vmatpush1.bf16.msra.mxu0 %v653
    %1079 = vmatprep.subr.bf16.mxu0 0
    %1080 = vmatpush2.bf16.msra.mxu0 0
    %1081 = vmatprep.subr.bf16.mxu0 0
    %1082 = vmatpush2.bf16.msra.mxu0 0
    %1083 = vmatprep.subr.bf16.mxu0 0
    %1084 = vmatpush2.bf16.msra.mxu0 0
    %1085 = vmatprep.subr.bf16.mxu0 0
    %1086 = vmatpush2.bf16.msra.mxu0 0
    %1087 = vmatprep.subr.bf16.mxu0 0
    %1088 = vmatpush2.bf16.msra.mxu0 0
    %1089 = vmatprep.subr.bf16.mxu0 0
    %1090 = vmatpush2.bf16.msra.mxu0 0
    %1091 = vmatprep.subr.bf16.mxu0 0
    %1092 = vmatpush2.bf16.msra.mxu0 0
    %1093 = vmatprep.subr.bf16.mxu0 0
    %1094 = vmatpush2.bf16.msra.mxu0 0
    %1095 = vmatprep.mubr.bf16.mxu0 0
    %1096 = vmatmul.mubr.bf16.gmra.mxu0 %v928
    %v1097 = vpop.f32.mrf.mxu0
    %v1098 = vadd.f32 0.0, %v1097
    %v1099 = vpop.f32.mrf.mxu0
    %v1100 = vpop.f32.mrf.mxu0
    %v1101 = vpop.f32.mrf.mxu0
    %1102 = vdwg.mxu0
    %v1104 = vrot.slane %v1098, 6
    %v1106 = vadd.f32 %v286, %v1104
    %v1107 = vmul.f32 %v974, 0.5
    %v1108 = vtanh.pop %v1107
    %v1109 = vmul.f32 %v1108, 0.5
    %v1110 = vadd.f32 %v1109, 0.5
    %v1111 = vmul.f32 %v1018, 0.5
    %v1112 = vtanh.pop %v1111
    %v1113 = vmul.f32 %v1112, 0.5
    %v1114 = vadd.f32 %v1113, 0.5
    %v1115 = vtanh.pop %v1062
    %v1116 = vmul.f32 %v1106, 0.5
    %v1117 = vtanh.pop %v1116
    %v1118 = vmul.f32 %v1117, 0.5
    %v1119 = vadd.f32 %v1118, 0.5
    %v1121 = vrot.slane %v923, 7
    %v1123 = vmul.f32 %v1114, %v1121
    %v1124 = vmul.f32 %v1110, %v1115
    %v1125 = vadd.f32 %v1123, %v1124
    %v1126 = vtanh.pop %v1125
    %v1127 = vmul.f32 %v1119, %v1126
    %v1128 = vpack.c.bf16 %v1127, %v1127
    %v1130 = vrot.slane %v1128, 1
    %1132 = vmatprep.subr.bf16.mxu0 0
    %1133 = vmatpush1.bf16.msra.mxu0 %v345
    %1134 = vmatprep.subr.bf16.mxu0 0
    %1135 = vmatpush1.bf16.msra.mxu0 %v344
    %1136 = vmatprep.subr.bf16.mxu0 0
    %1137 = vmatpush1.bf16.msra.mxu0 %v343
    %1138 = vmatprep.subr.bf16.mxu0 0
    %1139 = vmatpush1.bf16.msra.mxu0 %v342
    %1140 = vmatprep.subr.bf16.mxu0 0
    %1141 = vmatpush1.bf16.msra.mxu0 %v341
    %1142 = vmatprep.subr.bf16.mxu0 0
    %1143 = vmatpush1.bf16.msra.mxu0 %v340
    %1144 = vmatprep.subr.bf16.mxu0 0
    %1145 = vmatpush1.bf16.msra.mxu0 %v339
    %1146 = vmatprep.subr.bf16.mxu0 0
    %1147 = vmatpush1.bf16.msra.mxu0 %v338
    %1148 = vmatprep.subr.bf16.mxu0 0
    %1149 = vmatpush2.bf16.msra.mxu0 0
    %1150 = vmatprep.subr.bf16.mxu0 0
    %1151 = vmatpush2.bf16.msra.mxu0 0
    %1152 = vmatprep.subr.bf16.mxu0 0
    %1153 = vmatpush2.bf16.msra.mxu0 0
    %1154 = vmatprep.subr.bf16.mxu0 0
    %1155 = vmatpush2.bf16.msra.mxu0 0
    %1156 = vmatprep.subr.bf16.mxu0 0
    %1157 = vmatpush2.bf16.msra.mxu0 0
    %1158 = vmatprep.subr.bf16.mxu0 0
    %1159 = vmatpush2.bf16.msra.mxu0 0
    %1160 = vmatprep.subr.bf16.mxu0 0
    %1161 = vmatpush2.bf16.msra.mxu0 0
    %1162 = vmatprep.subr.bf16.mxu0 0
    %1163 = vmatpush2.bf16.msra.mxu0 0
    %1164 = vmatprep.mubr.bf16.mxu0 0
    %1165 = vmatmul.mubr.bf16.gmra.mxu0 %v1130
    %v1166 = vpop.f32.mrf.mxu0
    %v1167 = vadd.f32 0.0, %v1166
    %v1168 = vpop.f32.mrf.mxu0
    %v1169 = vpop.f32.mrf.mxu0
    %v1170 = vpop.f32.mrf.mxu0
    %1171 = vdwg.mxu0
    %v1173 = vrot.slane %v1167, 5
    %v1175 = vadd.f32 %v243, %v1173
    %1176 = vmatprep.subr.bf16.mxu0 0
    %1177 = vmatpush1.bf16.msra.mxu0 %v450
    %1178 = vmatprep.subr.bf16.mxu0 0
    %1179 = vmatpush1.bf16.msra.mxu0 %v449
    %1180 = vmatprep.subr.bf16.mxu0 0
    %1181 = vmatpush1.bf16.msra.mxu0 %v448
    %1182 = vmatprep.subr.bf16.mxu0 0
    %1183 = vmatpush1.bf16.msra.mxu0 %v447
    %1184 = vmatprep.subr.bf16.mxu0 0
    %1185 = vmatpush1.bf16.msra.mxu0 %v446
    %1186 = vmatprep.subr.bf16.mxu0 0
    %1187 = vmatpush1.bf16.msra.mxu0 %v445
    %1188 = vmatprep.subr.bf16.mxu0 0
    %1189 = vmatpush1.bf16.msra.mxu0 %v444
    %1190 = vmatprep.subr.bf16.mxu0 0
    %1191 = vmatpush1.bf16.msra.mxu0 %v443
    %1192 = vmatprep.subr.bf16.mxu0 0
    %1193 = vmatpush2.bf16.msra.mxu0 0
    %1194 = vmatprep.subr.bf16.mxu0 0
    %1195 = vmatpush2.bf16.msra.mxu0 0
    %1196 = vmatprep.subr.bf16.mxu0 0
    %1197 = vmatpush2.bf16.msra.mxu0 0
    %1198 = vmatprep.subr.bf16.mxu0 0
    %1199 = vmatpush2.bf16.msra.mxu0 0
    %1200 = vmatprep.subr.bf16.mxu0 0
    %1201 = vmatpush2.bf16.msra.mxu0 0
    %1202 = vmatprep.subr.bf16.mxu0 0
    %1203 = vmatpush2.bf16.msra.mxu0 0
    %1204 = vmatprep.subr.bf16.mxu0 0
    %1205 = vmatpush2.bf16.msra.mxu0 0
    %1206 = vmatprep.subr.bf16.mxu0 0
    %1207 = vmatpush2.bf16.msra.mxu0 0
    %1208 = vmatprep.mubr.bf16.mxu0 0
    %1209 = vmatmul.mubr.bf16.gmra.mxu0 %v1130
    %v1210 = vpop.f32.mrf.mxu0
    %v1211 = vadd.f32 0.0, %v1210
    %v1212 = vpop.f32.mrf.mxu0
    %v1213 = vpop.f32.mrf.mxu0
    %v1214 = vpop.f32.mrf.mxu0
    %1215 = vdwg.mxu0
    %v1217 = vrot.slane %v1211, 5
    %v1219 = vadd.f32 %v245, %v1217
    %1220 = vmatprep.subr.bf16.mxu0 0
    %1221 = vmatpush1.bf16.msra.mxu0 %v555
    %1222 = vmatprep.subr.bf16.mxu0 0
    %1223 = vmatpush1.bf16.msra.mxu0 %v554
    %1224 = vmatprep.subr.bf16.mxu0 0
    %1225 = vmatpush1.bf16.msra.mxu0 %v553
    %1226 = vmatprep.subr.bf16.mxu0 0
    %1227 = vmatpush1.bf16.msra.mxu0 %v552
    %1228 = vmatprep.subr.bf16.mxu0 0
    %1229 = vmatpush1.bf16.msra.mxu0 %v551
    %1230 = vmatprep.subr.bf16.mxu0 0
    %1231 = vmatpush1.bf16.msra.mxu0 %v550
    %1232 = vmatprep.subr.bf16.mxu0 0
    %1233 = vmatpush1.bf16.msra.mxu0 %v549
    %1234 = vmatprep.subr.bf16.mxu0 0
    %1235 = vmatpush1.bf16.msra.mxu0 %v548
    %1236 = vmatprep.subr.bf16.mxu0 0
    %1237 = vmatpush2.bf16.msra.mxu0 0
    %1238 = vmatprep.subr.bf16.mxu0 0
    %1239 = vmatpush2.bf16.msra.mxu0 0
    %1240 = vmatprep.subr.bf16.mxu0 0
    %1241 = vmatpush2.bf16.msra.mxu0 0
    %1242 = vmatprep.subr.bf16.mxu0 0
    %1243 = vmatpush2.bf16.msra.mxu0 0
    %1244 = vmatprep.subr.bf16.mxu0 0
    %1245 = vmatpush2.bf16.msra.mxu0 0
    %1246 = vmatprep.subr.bf16.mxu0 0
    %1247 = vmatpush2.bf16.msra.mxu0 0
    %1248 = vmatprep.subr.bf16.mxu0 0
    %1249 = vmatpush2.bf16.msra.mxu0 0
    %1250 = vmatprep.subr.bf16.mxu0 0
    %1251 = vmatpush2.bf16.msra.mxu0 0
    %1252 = vmatprep.mubr.bf16.mxu0 0
    %1253 = vmatmul.mubr.bf16.gmra.mxu0 %v1130
    %v1254 = vpop.f32.mrf.mxu0
    %v1255 = vadd.f32 0.0, %v1254
    %v1256 = vpop.f32.mrf.mxu0
    %v1257 = vpop.f32.mrf.mxu0
    %v1258 = vpop.f32.mrf.mxu0
    %1259 = vdwg.mxu0
    %v1261 = vrot.slane %v1255, 5
    %v1263 = vadd.f32 %v284, %v1261
    %1264 = vmatprep.subr.bf16.mxu0 0
    %1265 = vmatpush1.bf16.msra.mxu0 %v660
    %1266 = vmatprep.subr.bf16.mxu0 0
    %1267 = vmatpush1.bf16.msra.mxu0 %v659
    %1268 = vmatprep.subr.bf16.mxu0 0
    %1269 = vmatpush1.bf16.msra.mxu0 %v658
    %1270 = vmatprep.subr.bf16.mxu0 0
    %1271 = vmatpush1.bf16.msra.mxu0 %v657
    %1272 = vmatprep.subr.bf16.mxu0 0
    %1273 = vmatpush1.bf16.msra.mxu0 %v656
    %1274 = vmatprep.subr.bf16.mxu0 0
    %1275 = vmatpush1.bf16.msra.mxu0 %v655
    %1276 = vmatprep.subr.bf16.mxu0 0
    %1277 = vmatpush1.bf16.msra.mxu0 %v654
    %1278 = vmatprep.subr.bf16.mxu0 0
    %1279 = vmatpush1.bf16.msra.mxu0 %v653
    %1280 = vmatprep.subr.bf16.mxu0 0
    %1281 = vmatpush2.bf16.msra.mxu0 0
    %1282 = vmatprep.subr.bf16.mxu0 0
    %1283 = vmatpush2.bf16.msra.mxu0 0
    %1284 = vmatprep.subr.bf16.mxu0 0
    %1285 = vmatpush2.bf16.msra.mxu0 0
    %1286 = vmatprep.subr.bf16.mxu0 0
    %1287 = vmatpush2.bf16.msra.mxu0 0
    %1288 = vmatprep.subr.bf16.mxu0 0
    %1289 = vmatpush2.bf16.msra.mxu0 0
    %1290 = vmatprep.subr.bf16.mxu0 0
    %1291 = vmatpush2.bf16.msra.mxu0 0
    %1292 = vmatprep.subr.bf16.mxu0 0
    %1293 = vmatpush2.bf16.msra.mxu0 0
    %1294 = vmatprep.subr.bf16.mxu0 0
    %1295 = vmatpush2.bf16.msra.mxu0 0
    %1296 = vmatprep.mubr.bf16.mxu0 0
    %1297 = vmatmul.mubr.bf16.gmra.mxu0 %v1130
    %v1298 = vpop.f32.mrf.mxu0
    %v1299 = vadd.f32 0.0, %v1298
    %v1300 = vpop.f32.mrf.mxu0
    %v1301 = vpop.f32.mrf.mxu0
    %v1302 = vpop.f32.mrf.mxu0
    %1303 = vdwg.mxu0
    %v1305 = vrot.slane %v1299, 5
    %v1307 = vadd.f32 %v286, %v1305
    %v1308 = vmul.f32 %v1175, 0.5
    %v1309 = vtanh.pop %v1308
    %v1310 = vmul.f32 %v1309, 0.5
    %v1311 = vadd.f32 %v1310, 0.5
    %v1312 = vmul.f32 %v1219, 0.5
    %v1313 = vtanh.pop %v1312
    %v1314 = vmul.f32 %v1313, 0.5
    %v1315 = vadd.f32 %v1314, 0.5
    %v1316 = vtanh.pop %v1263
    %v1317 = vmul.f32 %v1307, 0.5
    %v1318 = vtanh.pop %v1317
    %v1319 = vmul.f32 %v1318, 0.5
    %v1320 = vadd.f32 %v1319, 0.5
    %v1322 = vrot.slane %v1125, 7
    %v1324 = vmul.f32 %v1315, %v1322
    %v1325 = vmul.f32 %v1311, %v1316
    %v1326 = vadd.f32 %v1324, %v1325
    %v1327 = vtanh.pop %v1326
    %v1328 = vmul.f32 %v1320, %v1327
    %v1329 = vpack.c.bf16 %v1328, %v1328
    %v1331 = vshrl.u32 %v1329, 16
    %v1333 = vrot.slane %v1331, 1
    %1335 = vmatprep.subr.bf16.mxu0 0
    %1336 = vmatpush1.bf16.msra.mxu0 %v345
    %1337 = vmatprep.subr.bf16.mxu0 0
    %1338 = vmatpush1.bf16.msra.mxu0 %v344
    %1339 = vmatprep.subr.bf16.mxu0 0
    %1340 = vmatpush1.bf16.msra.mxu0 %v343
    %1341 = vmatprep.subr.bf16.mxu0 0
    %1342 = vmatpush1.bf16.msra.mxu0 %v342
    %1343 = vmatprep.subr.bf16.mxu0 0
    %1344 = vmatpush1.bf16.msra.mxu0 %v341
    %1345 = vmatprep.subr.bf16.mxu0 0
    %1346 = vmatpush1.bf16.msra.mxu0 %v340
    %1347 = vmatprep.subr.bf16.mxu0 0
    %1348 = vmatpush1.bf16.msra.mxu0 %v339
    %1349 = vmatprep.subr.bf16.mxu0 0
    %1350 = vmatpush1.bf16.msra.mxu0 %v338
    %1351 = vmatprep.subr.bf16.mxu0 0
    %1352 = vmatpush2.bf16.msra.mxu0 0
    %1353 = vmatprep.subr.bf16.mxu0 0
    %1354 = vmatpush2.bf16.msra.mxu0 0
    %1355 = vmatprep.subr.bf16.mxu0 0
    %1356 = vmatpush2.bf16.msra.mxu0 0
    %1357 = vmatprep.subr.bf16.mxu0 0
    %1358 = vmatpush2.bf16.msra.mxu0 0
    %1359 = vmatprep.subr.bf16.mxu0 0
    %1360 = vmatpush2.bf16.msra.mxu0 0
    %1361 = vmatprep.subr.bf16.mxu0 0
    %1362 = vmatpush2.bf16.msra.mxu0 0
    %1363 = vmatprep.subr.bf16.mxu0 0
    %1364 = vmatpush2.bf16.msra.mxu0 0
    %1365 = vmatprep.subr.bf16.mxu0 0
    %1366 = vmatpush2.bf16.msra.mxu0 0
    %1367 = vmatprep.mubr.bf16.mxu0 0
    %1368 = vmatmul.mubr.bf16.gmra.mxu0 %v1333
    %v1369 = vpop.f32.mrf.mxu0
    %v1370 = vadd.f32 0.0, %v1369
    %v1371 = vpop.f32.mrf.mxu0
    %v1372 = vpop.f32.mrf.mxu0
    %v1373 = vpop.f32.mrf.mxu0
    %1374 = vdwg.mxu0
    %v1376 = vrot.slane %v1370, 4
    %v1378 = vadd.f32 %v243, %v1376
    %1379 = vmatprep.subr.bf16.mxu0 0
    %1380 = vmatpush1.bf16.msra.mxu0 %v450
    %1381 = vmatprep.subr.bf16.mxu0 0
    %1382 = vmatpush1.bf16.msra.mxu0 %v449
    %1383 = vmatprep.subr.bf16.mxu0 0
    %1384 = vmatpush1.bf16.msra.mxu0 %v448
    %1385 = vmatprep.subr.bf16.mxu0 0
    %1386 = vmatpush1.bf16.msra.mxu0 %v447
    %1387 = vmatprep.subr.bf16.mxu0 0
    %1388 = vmatpush1.bf16.msra.mxu0 %v446
    %1389 = vmatprep.subr.bf16.mxu0 0
    %1390 = vmatpush1.bf16.msra.mxu0 %v445
    %1391 = vmatprep.subr.bf16.mxu0 0
    %1392 = vmatpush1.bf16.msra.mxu0 %v444
    %1393 = vmatprep.subr.bf16.mxu0 0
    %1394 = vmatpush1.bf16.msra.mxu0 %v443
    %1395 = vmatprep.subr.bf16.mxu0 0
    %1396 = vmatpush2.bf16.msra.mxu0 0
    %1397 = vmatprep.subr.bf16.mxu0 0
    %1398 = vmatpush2.bf16.msra.mxu0 0
    %1399 = vmatprep.subr.bf16.mxu0 0
    %1400 = vmatpush2.bf16.msra.mxu0 0
    %1401 = vmatprep.subr.bf16.mxu0 0
    %1402 = vmatpush2.bf16.msra.mxu0 0
    %1403 = vmatprep.subr.bf16.mxu0 0
    %1404 = vmatpush2.bf16.msra.mxu0 0
    %1405 = vmatprep.subr.bf16.mxu0 0
    %1406 = vmatpush2.bf16.msra.mxu0 0
    %1407 = vmatprep.subr.bf16.mxu0 0
    %1408 = vmatpush2.bf16.msra.mxu0 0
    %1409 = vmatprep.subr.bf16.mxu0 0
    %1410 = vmatpush2.bf16.msra.mxu0 0
    %1411 = vmatprep.mubr.bf16.mxu0 0
    %1412 = vmatmul.mubr.bf16.gmra.mxu0 %v1333
    %v1413 = vpop.f32.mrf.mxu0
    %v1414 = vadd.f32 0.0, %v1413
    %v1415 = vpop.f32.mrf.mxu0
    %v1416 = vpop.f32.mrf.mxu0
    %v1417 = vpop.f32.mrf.mxu0
    %1418 = vdwg.mxu0
    %v1420 = vrot.slane %v1414, 4
    %v1422 = vadd.f32 %v245, %v1420
    %1423 = vmatprep.subr.bf16.mxu0 0
    %1424 = vmatpush1.bf16.msra.mxu0 %v555
    %1425 = vmatprep.subr.bf16.mxu0 0
    %1426 = vmatpush1.bf16.msra.mxu0 %v554
    %1427 = vmatprep.subr.bf16.mxu0 0
    %1428 = vmatpush1.bf16.msra.mxu0 %v553
    %1429 = vmatprep.subr.bf16.mxu0 0
    %1430 = vmatpush1.bf16.msra.mxu0 %v552
    %1431 = vmatprep.subr.bf16.mxu0 0
    %1432 = vmatpush1.bf16.msra.mxu0 %v551
    %1433 = vmatprep.subr.bf16.mxu0 0
    %1434 = vmatpush1.bf16.msra.mxu0 %v550
    %1435 = vmatprep.subr.bf16.mxu0 0
    %1436 = vmatpush1.bf16.msra.mxu0 %v549
    %1437 = vmatprep.subr.bf16.mxu0 0
    %1438 = vmatpush1.bf16.msra.mxu0 %v548
    %1439 = vmatprep.subr.bf16.mxu0 0
    %1440 = vmatpush2.bf16.msra.mxu0 0
    %1441 = vmatprep.subr.bf16.mxu0 0
    %1442 = vmatpush2.bf16.msra.mxu0 0
    %1443 = vmatprep.subr.bf16.mxu0 0
    %1444 = vmatpush2.bf16.msra.mxu0 0
    %1445 = vmatprep.subr.bf16.mxu0 0
    %1446 = vmatpush2.bf16.msra.mxu0 0
    %1447 = vmatprep.subr.bf16.mxu0 0
    %1448 = vmatpush2.bf16.msra.mxu0 0
    %1449 = vmatprep.subr.bf16.mxu0 0
    %1450 = vmatpush2.bf16.msra.mxu0 0
    %1451 = vmatprep.subr.bf16.mxu0 0
    %1452 = vmatpush2.bf16.msra.mxu0 0
    %1453 = vmatprep.subr.bf16.mxu0 0
    %1454 = vmatpush2.bf16.msra.mxu0 0
    %1455 = vmatprep.mubr.bf16.mxu0 0
    %1456 = vmatmul.mubr.bf16.gmra.mxu0 %v1333
    %v1457 = vpop.f32.mrf.mxu0
    %v1458 = vadd.f32 0.0, %v1457
    %v1459 = vpop.f32.mrf.mxu0
    %v1460 = vpop.f32.mrf.mxu0
    %v1461 = vpop.f32.mrf.mxu0
    %1462 = vdwg.mxu0
    %v1464 = vrot.slane %v1458, 4
    %v1466 = vadd.f32 %v284, %v1464
    %1467 = vmatprep.subr.bf16.mxu0 0
    %1468 = vmatpush1.bf16.msra.mxu0 %v660
    %1469 = vmatprep.subr.bf16.mxu0 0
    %1470 = vmatpush1.bf16.msra.mxu0 %v659
    %1471 = vmatprep.subr.bf16.mxu0 0
    %1472 = vmatpush1.bf16.msra.mxu0 %v658
    %1473 = vmatprep.subr.bf16.mxu0 0
    %1474 = vmatpush1.bf16.msra.mxu0 %v657
    %1475 = vmatprep.subr.bf16.mxu0 0
    %1476 = vmatpush1.bf16.msra.mxu0 %v656
    %1477 = vmatprep.subr.bf16.mxu0 0
    %1478 = vmatpush1.bf16.msra.mxu0 %v655
    %1479 = vmatprep.subr.bf16.mxu0 0
    %1480 = vmatpush1.bf16.msra.mxu0 %v654
    %1481 = vmatprep.subr.bf16.mxu0 0
    %1482 = vmatpush1.bf16.msra.mxu0 %v653
    %1483 = vmatprep.subr.bf16.mxu0 0
    %1484 = vmatpush2.bf16.msra.mxu0 0
    %1485 = vmatprep.subr.bf16.mxu0 0
    %1486 = vmatpush2.bf16.msra.mxu0 0
    %1487 = vmatprep.subr.bf16.mxu0 0
    %1488 = vmatpush2.bf16.msra.mxu0 0
    %1489 = vmatprep.subr.bf16.mxu0 0
    %1490 = vmatpush2.bf16.msra.mxu0 0
    %1491 = vmatprep.subr.bf16.mxu0 0
    %1492 = vmatpush2.bf16.msra.mxu0 0
    %1493 = vmatprep.subr.bf16.mxu0 0
    %1494 = vmatpush2.bf16.msra.mxu0 0
    %1495 = vmatprep.subr.bf16.mxu0 0
    %1496 = vmatpush2.bf16.msra.mxu0 0
    %1497 = vmatprep.subr.bf16.mxu0 0
    %1498 = vmatpush2.bf16.msra.mxu0 0
    %1499 = vmatprep.mubr.bf16.mxu0 0
    %1500 = vmatmul.mubr.bf16.gmra.mxu0 %v1333
    %v1501 = vpop.f32.mrf.mxu0
    %v1502 = vadd.f32 0.0, %v1501
    %v1503 = vpop.f32.mrf.mxu0
    %v1504 = vpop.f32.mrf.mxu0
    %v1505 = vpop.f32.mrf.mxu0
    %1506 = vdwg.mxu0
    %v1508 = vrot.slane %v1502, 4
    %v1510 = vadd.f32 %v286, %v1508
    %v1511 = vmul.f32 %v1378, 0.5
    %v1512 = vtanh.pop %v1511
    %v1513 = vmul.f32 %v1512, 0.5
    %v1514 = vadd.f32 %v1513, 0.5
    %v1515 = vmul.f32 %v1422, 0.5
    %v1516 = vtanh.pop %v1515
    %v1517 = vmul.f32 %v1516, 0.5
    %v1518 = vadd.f32 %v1517, 0.5
    %v1519 = vtanh.pop %v1466
    %v1520 = vmul.f32 %v1510, 0.5
    %v1521 = vtanh.pop %v1520
    %v1522 = vmul.f32 %v1521, 0.5
    %v1523 = vadd.f32 %v1522, 0.5
    %v1525 = vrot.slane %v1326, 7
    %v1527 = vmul.f32 %v1518, %v1525
    %v1528 = vmul.f32 %v1514, %v1519
    %v1529 = vadd.f32 %v1527, %v1528
    %v1530 = vtanh.pop %v1529
    %v1531 = vmul.f32 %v1523, %v1530
    %v1532 = vpack.c.bf16 %v1531, %v1531
    %v1534 = vrot.slane %v1532, 2
    %1536 = vmatprep.subr.bf16.mxu0 0
    %1537 = vmatpush1.bf16.msra.mxu0 %v345
    %1538 = vmatprep.subr.bf16.mxu0 0
    %1539 = vmatpush1.bf16.msra.mxu0 %v344
    %1540 = vmatprep.subr.bf16.mxu0 0
    %1541 = vmatpush1.bf16.msra.mxu0 %v343
    %1542 = vmatprep.subr.bf16.mxu0 0
    %1543 = vmatpush1.bf16.msra.mxu0 %v342
    %1544 = vmatprep.subr.bf16.mxu0 0
    %1545 = vmatpush1.bf16.msra.mxu0 %v341
    %1546 = vmatprep.subr.bf16.mxu0 0
    %1547 = vmatpush1.bf16.msra.mxu0 %v340
    %1548 = vmatprep.subr.bf16.mxu0 0
    %1549 = vmatpush1.bf16.msra.mxu0 %v339
    %1550 = vmatprep.subr.bf16.mxu0 0
    %1551 = vmatpush1.bf16.msra.mxu0 %v338
    %1552 = vmatprep.subr.bf16.mxu0 0
    %1553 = vmatpush2.bf16.msra.mxu0 0
    %1554 = vmatprep.subr.bf16.mxu0 0
    %1555 = vmatpush2.bf16.msra.mxu0 0
    %1556 = vmatprep.subr.bf16.mxu0 0
    %1557 = vmatpush2.bf16.msra.mxu0 0
    %1558 = vmatprep.subr.bf16.mxu0 0
    %1559 = vmatpush2.bf16.msra.mxu0 0
    %1560 = vmatprep.subr.bf16.mxu0 0
    %1561 = vmatpush2.bf16.msra.mxu0 0
    %1562 = vmatprep.subr.bf16.mxu0 0
    %1563 = vmatpush2.bf16.msra.mxu0 0
    %1564 = vmatprep.subr.bf16.mxu0 0
    %1565 = vmatpush2.bf16.msra.mxu0 0
    %1566 = vmatprep.subr.bf16.mxu0 0
    %1567 = vmatpush2.bf16.msra.mxu0 0
    %1568 = vmatprep.mubr.bf16.mxu0 0
    %1569 = vmatmul.mubr.bf16.gmra.mxu0 %v1534
    %v1570 = vpop.f32.mrf.mxu0
    %v1571 = vadd.f32 0.0, %v1570
    %v1572 = vpop.f32.mrf.mxu0
    %v1573 = vpop.f32.mrf.mxu0
    %v1574 = vpop.f32.mrf.mxu0
    %1575 = vdwg.mxu0
    %v1577 = vrot.slane %v1571, 3
    %v1579 = vadd.f32 %v243, %v1577
    %1580 = vmatprep.subr.bf16.mxu0 0
    %1581 = vmatpush1.bf16.msra.mxu0 %v450
    %1582 = vmatprep.subr.bf16.mxu0 0
    %1583 = vmatpush1.bf16.msra.mxu0 %v449
    %1584 = vmatprep.subr.bf16.mxu0 0
    %1585 = vmatpush1.bf16.msra.mxu0 %v448
    %1586 = vmatprep.subr.bf16.mxu0 0
    %1587 = vmatpush1.bf16.msra.mxu0 %v447
    %1588 = vmatprep.subr.bf16.mxu0 0
    %1589 = vmatpush1.bf16.msra.mxu0 %v446
    %1590 = vmatprep.subr.bf16.mxu0 0
    %1591 = vmatpush1.bf16.msra.mxu0 %v445
    %1592 = vmatprep.subr.bf16.mxu0 0
    %1593 = vmatpush1.bf16.msra.mxu0 %v444
    %1594 = vmatprep.subr.bf16.mxu0 0
    %1595 = vmatpush1.bf16.msra.mxu0 %v443
    %1596 = vmatprep.subr.bf16.mxu0 0
    %1597 = vmatpush2.bf16.msra.mxu0 0
    %1598 = vmatprep.subr.bf16.mxu0 0
    %1599 = vmatpush2.bf16.msra.mxu0 0
    %1600 = vmatprep.subr.bf16.mxu0 0
    %1601 = vmatpush2.bf16.msra.mxu0 0
    %1602 = vmatprep.subr.bf16.mxu0 0
    %1603 = vmatpush2.bf16.msra.mxu0 0
    %1604 = vmatprep.subr.bf16.mxu0 0
    %1605 = vmatpush2.bf16.msra.mxu0 0
    %1606 = vmatprep.subr.bf16.mxu0 0
    %1607 = vmatpush2.bf16.msra.mxu0 0
    %1608 = vmatprep.subr.bf16.mxu0 0
    %1609 = vmatpush2.bf16.msra.mxu0 0
    %1610 = vmatprep.subr.bf16.mxu0 0
    %1611 = vmatpush2.bf16.msra.mxu0 0
    %1612 = vmatprep.mubr.bf16.mxu0 0
    %1613 = vmatmul.mubr.bf16.gmra.mxu0 %v1534
    %v1614 = vpop.f32.mrf.mxu0
    %v1615 = vadd.f32 0.0, %v1614
    %v1616 = vpop.f32.mrf.mxu0
    %v1617 = vpop.f32.mrf.mxu0
    %v1618 = vpop.f32.mrf.mxu0
    %1619 = vdwg.mxu0
    %v1621 = vrot.slane %v1615, 3
    %v1623 = vadd.f32 %v245, %v1621
    %1624 = vmatprep.subr.bf16.mxu0 0
    %1625 = vmatpush1.bf16.msra.mxu0 %v555
    %1626 = vmatprep.subr.bf16.mxu0 0
    %1627 = vmatpush1.bf16.msra.mxu0 %v554
    %1628 = vmatprep.subr.bf16.mxu0 0
    %1629 = vmatpush1.bf16.msra.mxu0 %v553
    %1630 = vmatprep.subr.bf16.mxu0 0
    %1631 = vmatpush1.bf16.msra.mxu0 %v552
    %1632 = vmatprep.subr.bf16.mxu0 0
    %1633 = vmatpush1.bf16.msra.mxu0 %v551
    %1634 = vmatprep.subr.bf16.mxu0 0
    %1635 = vmatpush1.bf16.msra.mxu0 %v550
    %1636 = vmatprep.subr.bf16.mxu0 0
    %1637 = vmatpush1.bf16.msra.mxu0 %v549
    %1638 = vmatprep.subr.bf16.mxu0 0
    %1639 = vmatpush1.bf16.msra.mxu0 %v548
    %1640 = vmatprep.subr.bf16.mxu0 0
    %1641 = vmatpush2.bf16.msra.mxu0 0
    %1642 = vmatprep.subr.bf16.mxu0 0
    %1643 = vmatpush2.bf16.msra.mxu0 0
    %1644 = vmatprep.subr.bf16.mxu0 0
    %1645 = vmatpush2.bf16.msra.mxu0 0
    %1646 = vmatprep.subr.bf16.mxu0 0
    %1647 = vmatpush2.bf16.msra.mxu0 0
    %1648 = vmatprep.subr.bf16.mxu0 0
    %1649 = vmatpush2.bf16.msra.mxu0 0
    %1650 = vmatprep.subr.bf16.mxu0 0
    %1651 = vmatpush2.bf16.msra.mxu0 0
    %1652 = vmatprep.subr.bf16.mxu0 0
    %1653 = vmatpush2.bf16.msra.mxu0 0
    %1654 = vmatprep.subr.bf16.mxu0 0
    %1655 = vmatpush2.bf16.msra.mxu0 0
    %1656 = vmatprep.mubr.bf16.mxu0 0
    %1657 = vmatmul.mubr.bf16.gmra.mxu0 %v1534
    %v1658 = vpop.f32.mrf.mxu0
    %v1659 = vadd.f32 0.0, %v1658
    %v1660 = vpop.f32.mrf.mxu0
    %v1661 = vpop.f32.mrf.mxu0
    %v1662 = vpop.f32.mrf.mxu0
    %1663 = vdwg.mxu0
    %v1665 = vrot.slane %v1659, 3
    %v1667 = vadd.f32 %v284, %v1665
    %1668 = vmatprep.subr.bf16.mxu0 0
    %1669 = vmatpush1.bf16.msra.mxu0 %v660
    %1670 = vmatprep.subr.bf16.mxu0 0
    %1671 = vmatpush1.bf16.msra.mxu0 %v659
    %1672 = vmatprep.subr.bf16.mxu0 0
    %1673 = vmatpush1.bf16.msra.mxu0 %v658
    %1674 = vmatprep.subr.bf16.mxu0 0
    %1675 = vmatpush1.bf16.msra.mxu0 %v657
    %1676 = vmatprep.subr.bf16.mxu0 0
    %1677 = vmatpush1.bf16.msra.mxu0 %v656
    %1678 = vmatprep.subr.bf16.mxu0 0
    %1679 = vmatpush1.bf16.msra.mxu0 %v655
    %1680 = vmatprep.subr.bf16.mxu0 0
    %1681 = vmatpush1.bf16.msra.mxu0 %v654
    %1682 = vmatprep.subr.bf16.mxu0 0
    %1683 = vmatpush1.bf16.msra.mxu0 %v653
    %1684 = vmatprep.subr.bf16.mxu0 0
    %1685 = vmatpush2.bf16.msra.mxu0 0
    %1686 = vmatprep.subr.bf16.mxu0 0
    %1687 = vmatpush2.bf16.msra.mxu0 0
    %1688 = vmatprep.subr.bf16.mxu0 0
    %1689 = vmatpush2.bf16.msra.mxu0 0
    %1690 = vmatprep.subr.bf16.mxu0 0
    %1691 = vmatpush2.bf16.msra.mxu0 0
    %1692 = vmatprep.subr.bf16.mxu0 0
    %1693 = vmatpush2.bf16.msra.mxu0 0
    %1694 = vmatprep.subr.bf16.mxu0 0
    %1695 = vmatpush2.bf16.msra.mxu0 0
    %1696 = vmatprep.subr.bf16.mxu0 0
    %1697 = vmatpush2.bf16.msra.mxu0 0
    %1698 = vmatprep.subr.bf16.mxu0 0
    %1699 = vmatpush2.bf16.msra.mxu0 0
    %1700 = vmatprep.mubr.bf16.mxu0 0
    %1701 = vmatmul.mubr.bf16.gmra.mxu0 %v1534
    %v1702 = vpop.f32.mrf.mxu0
    %v1703 = vadd.f32 0.0, %v1702
    %v1704 = vpop.f32.mrf.mxu0
    %v1705 = vpop.f32.mrf.mxu0
    %v1706 = vpop.f32.mrf.mxu0
    %1707 = vdwg.mxu0
    %v1709 = vrot.slane %v1703, 3
    %v1711 = vadd.f32 %v286, %v1709
    %v1712 = vmul.f32 %v1579, 0.5
    %v1713 = vtanh.pop %v1712
    %v1714 = vmul.f32 %v1713, 0.5
    %v1715 = vadd.f32 %v1714, 0.5
    %v1716 = vmul.f32 %v1623, 0.5
    %v1717 = vtanh.pop %v1716
    %v1718 = vmul.f32 %v1717, 0.5
    %v1719 = vadd.f32 %v1718, 0.5
    %v1720 = vtanh.pop %v1667
    %v1721 = vmul.f32 %v1711, 0.5
    %v1722 = vtanh.pop %v1721
    %v1723 = vmul.f32 %v1722, 0.5
    %v1724 = vadd.f32 %v1723, 0.5
    %v1726 = vrot.slane %v1529, 7
    %v1728 = vmul.f32 %v1719, %v1726
    %v1729 = vmul.f32 %v1715, %v1720
    %v1730 = vadd.f32 %v1728, %v1729
    %v1731 = vtanh.pop %v1730
    %v1732 = vmul.f32 %v1724, %v1731
    %v1733 = vpack.c.bf16 %v1732, %v1732
    %v1735 = vshrl.u32 %v1733, 16
    %v1737 = vrot.slane %v1735, 2
    %1739 = vmatprep.subr.bf16.mxu0 0
    %1740 = vmatpush1.bf16.msra.mxu0 %v345
    %1741 = vmatprep.subr.bf16.mxu0 0
    %1742 = vmatpush1.bf16.msra.mxu0 %v344
    %1743 = vmatprep.subr.bf16.mxu0 0
    %1744 = vmatpush1.bf16.msra.mxu0 %v343
    %1745 = vmatprep.subr.bf16.mxu0 0
    %1746 = vmatpush1.bf16.msra.mxu0 %v342
    %1747 = vmatprep.subr.bf16.mxu0 0
    %1748 = vmatpush1.bf16.msra.mxu0 %v341
    %1749 = vmatprep.subr.bf16.mxu0 0
    %1750 = vmatpush1.bf16.msra.mxu0 %v340
    %1751 = vmatprep.subr.bf16.mxu0 0
    %1752 = vmatpush1.bf16.msra.mxu0 %v339
    %1753 = vmatprep.subr.bf16.mxu0 0
    %1754 = vmatpush1.bf16.msra.mxu0 %v338
    %1755 = vmatprep.subr.bf16.mxu0 0
    %1756 = vmatpush2.bf16.msra.mxu0 0
    %1757 = vmatprep.subr.bf16.mxu0 0
    %1758 = vmatpush2.bf16.msra.mxu0 0
    %1759 = vmatprep.subr.bf16.mxu0 0
    %1760 = vmatpush2.bf16.msra.mxu0 0
    %1761 = vmatprep.subr.bf16.mxu0 0
    %1762 = vmatpush2.bf16.msra.mxu0 0
    %1763 = vmatprep.subr.bf16.mxu0 0
    %1764 = vmatpush2.bf16.msra.mxu0 0
    %1765 = vmatprep.subr.bf16.mxu0 0
    %1766 = vmatpush2.bf16.msra.mxu0 0
    %1767 = vmatprep.subr.bf16.mxu0 0
    %1768 = vmatpush2.bf16.msra.mxu0 0
    %1769 = vmatprep.subr.bf16.mxu0 0
    %1770 = vmatpush2.bf16.msra.mxu0 0
    %1771 = vmatprep.mubr.bf16.mxu0 0
    %1772 = vmatmul.mubr.bf16.gmra.mxu0 %v1737
    %v1773 = vpop.f32.mrf.mxu0
    %v1774 = vadd.f32 0.0, %v1773
    %v1775 = vpop.f32.mrf.mxu0
    %v1776 = vpop.f32.mrf.mxu0
    %v1777 = vpop.f32.mrf.mxu0
    %1778 = vdwg.mxu0
    %v1780 = vrot.slane %v1774, 2
    %v1782 = vadd.f32 %v243, %v1780
    %1783 = vmatprep.subr.bf16.mxu0 0
    %1784 = vmatpush1.bf16.msra.mxu0 %v450
    %1785 = vmatprep.subr.bf16.mxu0 0
    %1786 = vmatpush1.bf16.msra.mxu0 %v449
    %1787 = vmatprep.subr.bf16.mxu0 0
    %1788 = vmatpush1.bf16.msra.mxu0 %v448
    %1789 = vmatprep.subr.bf16.mxu0 0
    %1790 = vmatpush1.bf16.msra.mxu0 %v447
    %1791 = vmatprep.subr.bf16.mxu0 0
    %1792 = vmatpush1.bf16.msra.mxu0 %v446
    %1793 = vmatprep.subr.bf16.mxu0 0
    %1794 = vmatpush1.bf16.msra.mxu0 %v445
    %1795 = vmatprep.subr.bf16.mxu0 0
    %1796 = vmatpush1.bf16.msra.mxu0 %v444
    %1797 = vmatprep.subr.bf16.mxu0 0
    %1798 = vmatpush1.bf16.msra.mxu0 %v443
    %1799 = vmatprep.subr.bf16.mxu0 0
    %1800 = vmatpush2.bf16.msra.mxu0 0
    %1801 = vmatprep.subr.bf16.mxu0 0
    %1802 = vmatpush2.bf16.msra.mxu0 0
    %1803 = vmatprep.subr.bf16.mxu0 0
    %1804 = vmatpush2.bf16.msra.mxu0 0
    %1805 = vmatprep.subr.bf16.mxu0 0
    %1806 = vmatpush2.bf16.msra.mxu0 0
    %1807 = vmatprep.subr.bf16.mxu0 0
    %1808 = vmatpush2.bf16.msra.mxu0 0
    %1809 = vmatprep.subr.bf16.mxu0 0
    %1810 = vmatpush2.bf16.msra.mxu0 0
    %1811 = vmatprep.subr.bf16.mxu0 0
    %1812 = vmatpush2.bf16.msra.mxu0 0
    %1813 = vmatprep.subr.bf16.mxu0 0
    %1814 = vmatpush2.bf16.msra.mxu0 0
    %1815 = vmatprep.mubr.bf16.mxu0 0
    %1816 = vmatmul.mubr.bf16.gmra.mxu0 %v1737
    %v1817 = vpop.f32.mrf.mxu0
    %v1818 = vadd.f32 0.0, %v1817
    %v1819 = vpop.f32.mrf.mxu0
    %v1820 = vpop.f32.mrf.mxu0
    %v1821 = vpop.f32.mrf.mxu0
    %1822 = vdwg.mxu0
    %v1824 = vrot.slane %v1818, 2
    %v1826 = vadd.f32 %v245, %v1824
    %1827 = vmatprep.subr.bf16.mxu0 0
    %1828 = vmatpush1.bf16.msra.mxu0 %v555
    %1829 = vmatprep.subr.bf16.mxu0 0
    %1830 = vmatpush1.bf16.msra.mxu0 %v554
    %1831 = vmatprep.subr.bf16.mxu0 0
    %1832 = vmatpush1.bf16.msra.mxu0 %v553
    %1833 = vmatprep.subr.bf16.mxu0 0
    %1834 = vmatpush1.bf16.msra.mxu0 %v552
    %1835 = vmatprep.subr.bf16.mxu0 0
    %1836 = vmatpush1.bf16.msra.mxu0 %v551
    %1837 = vmatprep.subr.bf16.mxu0 0
    %1838 = vmatpush1.bf16.msra.mxu0 %v550
    %1839 = vmatprep.subr.bf16.mxu0 0
    %1840 = vmatpush1.bf16.msra.mxu0 %v549
    %1841 = vmatprep.subr.bf16.mxu0 0
    %1842 = vmatpush1.bf16.msra.mxu0 %v548
    %1843 = vmatprep.subr.bf16.mxu0 0
    %1844 = vmatpush2.bf16.msra.mxu0 0
    %1845 = vmatprep.subr.bf16.mxu0 0
    %1846 = vmatpush2.bf16.msra.mxu0 0
    %1847 = vmatprep.subr.bf16.mxu0 0
    %1848 = vmatpush2.bf16.msra.mxu0 0
    %1849 = vmatprep.subr.bf16.mxu0 0
    %1850 = vmatpush2.bf16.msra.mxu0 0
    %1851 = vmatprep.subr.bf16.mxu0 0
    %1852 = vmatpush2.bf16.msra.mxu0 0
    %1853 = vmatprep.subr.bf16.mxu0 0
    %1854 = vmatpush2.bf16.msra.mxu0 0
    %1855 = vmatprep.subr.bf16.mxu0 0
    %1856 = vmatpush2.bf16.msra.mxu0 0
    %1857 = vmatprep.subr.bf16.mxu0 0
    %1858 = vmatpush2.bf16.msra.mxu0 0
    %1859 = vmatprep.mubr.bf16.mxu0 0
    %1860 = vmatmul.mubr.bf16.gmra.mxu0 %v1737
    %v1861 = vpop.f32.mrf.mxu0
    %v1862 = vadd.f32 0.0, %v1861
    %v1863 = vpop.f32.mrf.mxu0
    %v1864 = vpop.f32.mrf.mxu0
    %v1865 = vpop.f32.mrf.mxu0
    %1866 = vdwg.mxu0
    %v1868 = vrot.slane %v1862, 2
    %v1870 = vadd.f32 %v284, %v1868
    %1871 = vmatprep.subr.bf16.mxu0 0
    %1872 = vmatpush1.bf16.msra.mxu0 %v660
    %1873 = vmatprep.subr.bf16.mxu0 0
    %1874 = vmatpush1.bf16.msra.mxu0 %v659
    %1875 = vmatprep.subr.bf16.mxu0 0
    %1876 = vmatpush1.bf16.msra.mxu0 %v658
    %1877 = vmatprep.subr.bf16.mxu0 0
    %1878 = vmatpush1.bf16.msra.mxu0 %v657
    %1879 = vmatprep.subr.bf16.mxu0 0
    %1880 = vmatpush1.bf16.msra.mxu0 %v656
    %1881 = vmatprep.subr.bf16.mxu0 0
    %1882 = vmatpush1.bf16.msra.mxu0 %v655
    %1883 = vmatprep.subr.bf16.mxu0 0
    %1884 = vmatpush1.bf16.msra.mxu0 %v654
    %1885 = vmatprep.subr.bf16.mxu0 0
    %1886 = vmatpush1.bf16.msra.mxu0 %v653
    %1887 = vmatprep.subr.bf16.mxu0 0
    %1888 = vmatpush2.bf16.msra.mxu0 0
    %1889 = vmatprep.subr.bf16.mxu0 0
    %1890 = vmatpush2.bf16.msra.mxu0 0
    %1891 = vmatprep.subr.bf16.mxu0 0
    %1892 = vmatpush2.bf16.msra.mxu0 0
    %1893 = vmatprep.subr.bf16.mxu0 0
    %1894 = vmatpush2.bf16.msra.mxu0 0
    %1895 = vmatprep.subr.bf16.mxu0 0
    %1896 = vmatpush2.bf16.msra.mxu0 0
    %1897 = vmatprep.subr.bf16.mxu0 0
    %1898 = vmatpush2.bf16.msra.mxu0 0
    %1899 = vmatprep.subr.bf16.mxu0 0
    %1900 = vmatpush2.bf16.msra.mxu0 0
    %1901 = vmatprep.subr.bf16.mxu0 0
    %1902 = vmatpush2.bf16.msra.mxu0 0
    %1903 = vmatprep.mubr.bf16.mxu0 0
    %1904 = vmatmul.mubr.bf16.gmra.mxu0 %v1737
    %v1905 = vpop.f32.mrf.mxu0
    %v1906 = vadd.f32 0.0, %v1905
    %v1907 = vpop.f32.mrf.mxu0
    %v1908 = vpop.f32.mrf.mxu0
    %v1909 = vpop.f32.mrf.mxu0
    %1910 = vdwg.mxu0
    %v1912 = vrot.slane %v1906, 2
    %v1914 = vadd.f32 %v286, %v1912
    %v1915 = vmul.f32 %v1782, 0.5
    %v1916 = vtanh.pop %v1915
    %v1917 = vmul.f32 %v1916, 0.5
    %v1918 = vadd.f32 %v1917, 0.5
    %v1919 = vmul.f32 %v1826, 0.5
    %v1920 = vtanh.pop %v1919
    %v1921 = vmul.f32 %v1920, 0.5
    %v1922 = vadd.f32 %v1921, 0.5
    %v1923 = vtanh.pop %v1870
    %v1924 = vmul.f32 %v1914, 0.5
    %v1925 = vtanh.pop %v1924
    %v1926 = vmul.f32 %v1925, 0.5
    %v1927 = vadd.f32 %v1926, 0.5
    %v1929 = vrot.slane %v1730, 7
    %v1931 = vmul.f32 %v1922, %v1929
    %v1932 = vmul.f32 %v1918, %v1923
    %v1933 = vadd.f32 %v1931, %v1932
    %v1934 = vtanh.pop %v1933
    %v1935 = vmul.f32 %v1927, %v1934
    %v1936 = vpack.c.bf16 %v1935, %v1935
    %v1938 = vrot.slane %v1936, 3
    %1940 = vmatprep.subr.bf16.mxu0 0
    %1941 = vmatpush1.bf16.msra.mxu0 %v345
    %1942 = vmatprep.subr.bf16.mxu0 0
    %1943 = vmatpush1.bf16.msra.mxu0 %v344
    %1944 = vmatprep.subr.bf16.mxu0 0
    %1945 = vmatpush1.bf16.msra.mxu0 %v343
    %1946 = vmatprep.subr.bf16.mxu0 0
    %1947 = vmatpush1.bf16.msra.mxu0 %v342
    %1948 = vmatprep.subr.bf16.mxu0 0
    %1949 = vmatpush1.bf16.msra.mxu0 %v341
    %1950 = vmatprep.subr.bf16.mxu0 0
    %1951 = vmatpush1.bf16.msra.mxu0 %v340
    %1952 = vmatprep.subr.bf16.mxu0 0
    %1953 = vmatpush1.bf16.msra.mxu0 %v339
    %1954 = vmatprep.subr.bf16.mxu0 0
    %1955 = vmatpush1.bf16.msra.mxu0 %v338
    %1956 = vmatprep.subr.bf16.mxu0 0
    %1957 = vmatpush2.bf16.msra.mxu0 0
    %1958 = vmatprep.subr.bf16.mxu0 0
    %1959 = vmatpush2.bf16.msra.mxu0 0
    %1960 = vmatprep.subr.bf16.mxu0 0
    %1961 = vmatpush2.bf16.msra.mxu0 0
    %1962 = vmatprep.subr.bf16.mxu0 0
    %1963 = vmatpush2.bf16.msra.mxu0 0
    %1964 = vmatprep.subr.bf16.mxu0 0
    %1965 = vmatpush2.bf16.msra.mxu0 0
    %1966 = vmatprep.subr.bf16.mxu0 0
    %1967 = vmatpush2.bf16.msra.mxu0 0
    %1968 = vmatprep.subr.bf16.mxu0 0
    %1969 = vmatpush2.bf16.msra.mxu0 0
    %1970 = vmatprep.subr.bf16.mxu0 0
    %1971 = vmatpush2.bf16.msra.mxu0 0
    %1972 = vmatprep.mubr.bf16.mxu0 0
    %1973 = vmatmul.mubr.bf16.gmra.mxu0 %v1938
    %v1974 = vpop.f32.mrf.mxu0
    %v1975 = vadd.f32 0.0, %v1974
    %v1976 = vpop.f32.mrf.mxu0
    %v1977 = vpop.f32.mrf.mxu0
    %v1978 = vpop.f32.mrf.mxu0
    %1979 = vdwg.mxu0
    %v1981 = vrot.slane %v1975, 1
    %v1983 = vadd.f32 %v243, %v1981
    %1984 = vmatprep.subr.bf16.mxu0 0
    %1985 = vmatpush1.bf16.msra.mxu0 %v450
    %1986 = vmatprep.subr.bf16.mxu0 0
    %1987 = vmatpush1.bf16.msra.mxu0 %v449
    %1988 = vmatprep.subr.bf16.mxu0 0
    %1989 = vmatpush1.bf16.msra.mxu0 %v448
    %1990 = vmatprep.subr.bf16.mxu0 0
    %1991 = vmatpush1.bf16.msra.mxu0 %v447
    %1992 = vmatprep.subr.bf16.mxu0 0
    %1993 = vmatpush1.bf16.msra.mxu0 %v446
    %1994 = vmatprep.subr.bf16.mxu0 0
    %1995 = vmatpush1.bf16.msra.mxu0 %v445
    %1996 = vmatprep.subr.bf16.mxu0 0
    %1997 = vmatpush1.bf16.msra.mxu0 %v444
    %1998 = vmatprep.subr.bf16.mxu0 0
    %1999 = vmatpush1.bf16.msra.mxu0 %v443
    %2000 = vmatprep.subr.bf16.mxu0 0
    %2001 = vmatpush2.bf16.msra.mxu0 0
    %2002 = vmatprep.subr.bf16.mxu0 0
    %2003 = vmatpush2.bf16.msra.mxu0 0
    %2004 = vmatprep.subr.bf16.mxu0 0
    %2005 = vmatpush2.bf16.msra.mxu0 0
    %2006 = vmatprep.subr.bf16.mxu0 0
    %2007 = vmatpush2.bf16.msra.mxu0 0
    %2008 = vmatprep.subr.bf16.mxu0 0
    %2009 = vmatpush2.bf16.msra.mxu0 0
    %2010 = vmatprep.subr.bf16.mxu0 0
    %2011 = vmatpush2.bf16.msra.mxu0 0
    %2012 = vmatprep.subr.bf16.mxu0 0
    %2013 = vmatpush2.bf16.msra.mxu0 0
    %2014 = vmatprep.subr.bf16.mxu0 0
    %2015 = vmatpush2.bf16.msra.mxu0 0
    %2016 = vmatprep.mubr.bf16.mxu0 0
    %2017 = vmatmul.mubr.bf16.gmra.mxu0 %v1938
    %v2018 = vpop.f32.mrf.mxu0
    %v2019 = vadd.f32 0.0, %v2018
    %v2020 = vpop.f32.mrf.mxu0
    %v2021 = vpop.f32.mrf.mxu0
    %v2022 = vpop.f32.mrf.mxu0
    %2023 = vdwg.mxu0
    %v2025 = vrot.slane %v2019, 1
    %v2027 = vadd.f32 %v245, %v2025
    %2028 = vmatprep.subr.bf16.mxu0 0
    %2029 = vmatpush1.bf16.msra.mxu0 %v555
    %2030 = vmatprep.subr.bf16.mxu0 0
    %2031 = vmatpush1.bf16.msra.mxu0 %v554
    %2032 = vmatprep.subr.bf16.mxu0 0
    %2033 = vmatpush1.bf16.msra.mxu0 %v553
    %2034 = vmatprep.subr.bf16.mxu0 0
    %2035 = vmatpush1.bf16.msra.mxu0 %v552
    %2036 = vmatprep.subr.bf16.mxu0 0
    %2037 = vmatpush1.bf16.msra.mxu0 %v551
    %2038 = vmatprep.subr.bf16.mxu0 0
    %2039 = vmatpush1.bf16.msra.mxu0 %v550
    %2040 = vmatprep.subr.bf16.mxu0 0
    %2041 = vmatpush1.bf16.msra.mxu0 %v549
    %2042 = vmatprep.subr.bf16.mxu0 0
    %2043 = vmatpush1.bf16.msra.mxu0 %v548
    %2044 = vmatprep.subr.bf16.mxu0 0
    %2045 = vmatpush2.bf16.msra.mxu0 0
    %2046 = vmatprep.subr.bf16.mxu0 0
    %2047 = vmatpush2.bf16.msra.mxu0 0
    %2048 = vmatprep.subr.bf16.mxu0 0
    %2049 = vmatpush2.bf16.msra.mxu0 0
    %2050 = vmatprep.subr.bf16.mxu0 0
    %2051 = vmatpush2.bf16.msra.mxu0 0
    %2052 = vmatprep.subr.bf16.mxu0 0
    %2053 = vmatpush2.bf16.msra.mxu0 0
    %2054 = vmatprep.subr.bf16.mxu0 0
    %2055 = vmatpush2.bf16.msra.mxu0 0
    %2056 = vmatprep.subr.bf16.mxu0 0
    %2057 = vmatpush2.bf16.msra.mxu0 0
    %2058 = vmatprep.subr.bf16.mxu0 0
    %2059 = vmatpush2.bf16.msra.mxu0 0
    %2060 = vmatprep.mubr.bf16.mxu0 0
    %2061 = vmatmul.mubr.bf16.gmra.mxu0 %v1938
    %v2062 = vpop.f32.mrf.mxu0
    %v2063 = vadd.f32 0.0, %v2062
    %v2064 = vpop.f32.mrf.mxu0
    %v2065 = vpop.f32.mrf.mxu0
    %v2066 = vpop.f32.mrf.mxu0
    %2067 = vdwg.mxu0
    %v2069 = vrot.slane %v2063, 1
    %v2071 = vadd.f32 %v284, %v2069
    %2072 = vmatprep.subr.bf16.mxu0 0
    %2073 = vmatpush1.bf16.msra.mxu0 %v660
    %2074 = vmatprep.subr.bf16.mxu0 0
    %2075 = vmatpush1.bf16.msra.mxu0 %v659
    %2076 = vmatprep.subr.bf16.mxu0 0
    %2077 = vmatpush1.bf16.msra.mxu0 %v658
    %2078 = vmatprep.subr.bf16.mxu0 0
    %2079 = vmatpush1.bf16.msra.mxu0 %v657
    %2080 = vmatprep.subr.bf16.mxu0 0
    %2081 = vmatpush1.bf16.msra.mxu0 %v656
    %2082 = vmatprep.subr.bf16.mxu0 0
    %2083 = vmatpush1.bf16.msra.mxu0 %v655
    %2084 = vmatprep.subr.bf16.mxu0 0
    %2085 = vmatpush1.bf16.msra.mxu0 %v654
    %2086 = vmatprep.subr.bf16.mxu0 0
    %2087 = vmatpush1.bf16.msra.mxu0 %v653
    %2088 = vmatprep.subr.bf16.mxu0 0
    %2089 = vmatpush2.bf16.msra.mxu0 0
    %2090 = vmatprep.subr.bf16.mxu0 0
    %2091 = vmatpush2.bf16.msra.mxu0 0
    %2092 = vmatprep.subr.bf16.mxu0 0
    %2093 = vmatpush2.bf16.msra.mxu0 0
    %2094 = vmatprep.subr.bf16.mxu0 0
    %2095 = vmatpush2.bf16.msra.mxu0 0
    %2096 = vmatprep.subr.bf16.mxu0 0
    %2097 = vmatpush2.bf16.msra.mxu0 0
    %2098 = vmatprep.subr.bf16.mxu0 0
    %2099 = vmatpush2.bf16.msra.mxu0 0
    %2100 = vmatprep.subr.bf16.mxu0 0
    %2101 = vmatpush2.bf16.msra.mxu0 0
    %2102 = vmatprep.subr.bf16.mxu0 0
    %2103 = vmatpush2.bf16.msra.mxu0 0
    %2104 = vmatprep.mubr.bf16.mxu0 0
    %2105 = vmatmul.mubr.bf16.gmra.mxu0 %v1938
    %v2106 = vpop.f32.mrf.mxu0
    %v2107 = vadd.f32 0.0, %v2106
    %v2108 = vpop.f32.mrf.mxu0
    %v2109 = vpop.f32.mrf.mxu0
    %v2110 = vpop.f32.mrf.mxu0
    %2111 = vdwg.mxu0
    %v2113 = vrot.slane %v2107, 1
    %v2115 = vadd.f32 %v286, %v2113
    %v2116 = vmul.f32 %v1983, 0.5
    %v2117 = vtanh.pop %v2116
    %v2118 = vmul.f32 %v2117, 0.5
    %v2119 = vadd.f32 %v2118, 0.5
    %v2120 = vmul.f32 %v2027, 0.5
    %v2121 = vtanh.pop %v2120
    %v2122 = vmul.f32 %v2121, 0.5
    %v2123 = vadd.f32 %v2122, 0.5
    %v2124 = vtanh.pop %v2071
    %v2125 = vmul.f32 %v2115, 0.5
    %v2126 = vtanh.pop %v2125
    %v2127 = vmul.f32 %v2126, 0.5
    %v2128 = vadd.f32 %v2127, 0.5
    %v2130 = vrot.slane %v1933, 7
    %v2132 = vmul.f32 %v2123, %v2130
    %v2133 = vmul.f32 %v2119, %v2124
    %v2134 = vadd.f32 %v2132, %v2133
    %v2135 = vtanh.pop %v2134
    %v2136 = vmul.f32 %v2128, %v2135
    %v2137 = vpack.c.bf16 %v2136, %v2136
    %v2138 = vld [vmem:[#allocation10] sm:$0xf]
    %v2139 = vld [vmem:[#allocation10 + $0x4] sm:$0xf]
    %v2140 = vld [vmem:[#allocation10 + $0x8] sm:$0xf]
    %v2141 = vld [vmem:[#allocation10 + $0xc] sm:$0xf]
    %v2142 = vld [vmem:[#allocation10 + $0x10] sm:$0xf]
    %v2143 = vld [vmem:[#allocation10 + $0x14] sm:$0xf]
    %v2144 = vld [vmem:[#allocation10 + $0x18] sm:$0xf]
    %v2145 = vld [vmem:[#allocation10 + $0x1c] sm:$0xf]
    %v2146 = vld [vmem:[#allocation10 + $0x20] sm:$0xf]
    %v2147 = vld [vmem:[#allocation10 + $0x24] sm:$0xf]
    %v2148 = vld [vmem:[#allocation10 + $0x28] sm:$0xf]
    %v2149 = vld [vmem:[#allocation10 + $0x2c] sm:$0xf]
    %v2150 = vld [vmem:[#allocation10 + $0x30] sm:$0xf]
    %v2151 = vld [vmem:[#allocation10 + $0x34] sm:$0xf]
    %v2152 = vld [vmem:[#allocation10 + $0x38] sm:$0xf]
    %v2153 = vld [vmem:[#allocation10 + $0x3c] sm:$0xf]
    %v2154 = vld [vmem:[%s8] sm:$0x1]
    %v2156 = vshrl.u32 %v2137, 16
    %v2158 = vrot.slane %v2156, 3
    %v2176 = vunpack.c.l.b16 %v2138
    %v2177 = vunpack.c.l.b16 %v2139
    %v2178 = vunpack.c.l.b16 %v2140
    %v2179 = vunpack.c.l.b16 %v2141
    %v2180 = vunpack.c.l.b16 %v2142
    %v2181 = vunpack.c.l.b16 %v2143
    %v2182 = vunpack.c.l.b16 %v2144
    %v2183 = vunpack.c.l.b16 %v2145
    %v2184 = vunpack.c.l.b16 %v2146
    %v2185 = vunpack.c.l.b16 %v2147
    %v2186 = vunpack.c.l.b16 %v2148
    %v2187 = vunpack.c.l.b16 %v2149
    %v2188 = vunpack.c.l.b16 %v2150
    %v2189 = vunpack.c.l.b16 %v2151
    %v2190 = vunpack.c.l.b16 %v2152
    %v2191 = vunpack.c.l.b16 %v2153
    %v2192 = vpack.c.b16 %v2177, %v2176
    %v2193 = vpack.c.b16 %v2179, %v2178
    %v2194 = vpack.c.b16 %v2181, %v2180
    %v2195 = vpack.c.b16 %v2183, %v2182
    %v2196 = vpack.c.b16 %v2185, %v2184
    %v2197 = vpack.c.b16 %v2187, %v2186
    %v2198 = vpack.c.b16 %v2189, %v2188
    %v2199 = vpack.c.b16 %v2191, %v2190
    %2208 = vmatprep.subr.bf16.mxu0 0
    %2209 = vmatpush1.bf16.msra.mxu0 %v2199
    %2210 = vmatprep.subr.bf16.mxu0 0
    %2211 = vmatpush1.bf16.msra.mxu0 %v2198
    %2212 = vmatprep.subr.bf16.mxu0 0
    %2213 = vmatpush1.bf16.msra.mxu0 %v2197
    %2214 = vmatprep.subr.bf16.mxu0 0
    %2215 = vmatpush1.bf16.msra.mxu0 %v2196
    %2216 = vmatprep.subr.bf16.mxu0 0
    %2217 = vmatpush1.bf16.msra.mxu0 %v2195
    %2218 = vmatprep.subr.bf16.mxu0 0
    %2219 = vmatpush1.bf16.msra.mxu0 %v2194
    %2220 = vmatprep.subr.bf16.mxu0 0
    %2221 = vmatpush1.bf16.msra.mxu0 %v2193
    %2222 = vmatprep.subr.bf16.mxu0 0
    %2223 = vmatpush1.bf16.msra.mxu0 %v2192
    %2224 = vmatprep.subr.bf16.mxu0 0
    %2225 = vmatpush2.bf16.msra.mxu0 0
    %2226 = vmatprep.subr.bf16.mxu0 0
    %2227 = vmatpush2.bf16.msra.mxu0 0
    %2228 = vmatprep.subr.bf16.mxu0 0
    %2229 = vmatpush2.bf16.msra.mxu0 0
    %2230 = vmatprep.subr.bf16.mxu0 0
    %2231 = vmatpush2.bf16.msra.mxu0 0
    %2232 = vmatprep.subr.bf16.mxu0 0
    %2233 = vmatpush2.bf16.msra.mxu0 0
    %2234 = vmatprep.subr.bf16.mxu0 0
    %2235 = vmatpush2.bf16.msra.mxu0 0
    %2236 = vmatprep.subr.bf16.mxu0 0
    %2237 = vmatpush2.bf16.msra.mxu0 0
    %2238 = vmatprep.subr.bf16.mxu0 0
    %2239 = vmatpush2.bf16.msra.mxu0 0
    %2240 = vmatprep.mubr.bf16.mxu0 0
    %2241 = vmatmul.mubr.bf16.gmra.mxu0 %v2158
    %v2242 = vpop.f32.mrf.mxu0
    %v2243 = vadd.f32 %v2154, %v2242
    %v2244 = vpop.f32.mrf.mxu0
    %v2245 = vpop.f32.mrf.mxu0
    %v2246 = vpop.f32.mrf.mxu0
    %2247 = vdwg.mxu0
    %v2248 = vmul.f32 %v2243, 0.5
    %v2249 = vtanh.pop %v2248
    %v2250 = vmul.f32 %v2249, 0.5
    %v2251 = vadd.f32 %v2250, 0.5
    %2252 = vst [vmem:[%s9] sm:$0x1] %v2251
    // Predicated region
    $region62: #{tgen_sem_classifier_forward.1} parent=1 // pred_check
      _
    $region63: #{tgen_sem_classifier_forward.1} parent=1 // pred_check_branch
      %2254 = sbr.rel (0) target = $region65
    $region64: #{tgen_sem_classifier_forward.1} parent=1 // pred_region
      _
    $region65: #{tgen_sem_classifier_forward.1} parent=1 // pred_fallthru
      _
    // Predicated region
    $region66: #{tgen_sem_classifier_forward.1} parent=1 // pred_check
      _
    $region67: #{tgen_sem_classifier_forward.1} parent=1 // pred_check_branch
      %2256 = sbr.rel (0) target = $region69
    $region68: #{tgen_sem_classifier_forward.1} parent=1 // pred_region
      _
    $region69: #{tgen_sem_classifier_forward.1} parent=1 // pred_fallthru
      _
    %2257 = vsyncpa [#allocation3], 1
    %2258 = vsyncpa [#allocation5], 1
    %2259 = vsyncpa [#allocation8], 1
    %2260 = vsyncpa [#allocation11], 1

</llo_original>
